<compile_context>
chip_gen: v6e
topology: v6e:2x2x1
jax: 0.10.0
libtpu: 0.0.40
codegen_flags: <defaults>
</compile_context>

<pallas_src>
import functools
import math

import jax
import jax.numpy as jnp
from jax.experimental import pallas as pl
from jax.experimental.pallas import tpu as pltpu

INPUT_SIZE = 9
HIDDEN_SIZES = [256, 128, 64]
LATENT_SIZE = 64
LANE = 128  # TPU lane width: pad the 9-wide input/output features to this.

_ENC_DIMS = [INPUT_SIZE] + HIDDEN_SIZES + [LATENT_SIZE]                   # 9->256->128->64->64
_DEC_DIMS = [LATENT_SIZE] + list(reversed(HIDDEN_SIZES)) + [INPUT_SIZE]   # 64->64->128->256->9

# Tanh after every linear except the encoder's last and the decoder's last.
_ACTS = [True, True, True, False, True, True, True, False]


def _round_up(n, m):
    return ((n + m - 1) // m) * m


def _layer_dims():
    dims = []
    for i in range(len(_ENC_DIMS) - 1):
        dims.append((_ENC_DIMS[i], _ENC_DIMS[i + 1]))
    for i in range(len(_DEC_DIMS) - 1):
        dims.append((_DEC_DIMS[i], _DEC_DIMS[i + 1]))
    return dims


def init_params(key):
    """Deterministic synthetic weights (PyTorch-Linear-like uniform init)."""
    params = []
    for (fan_in, fan_out) in _layer_dims():
        key, kw, kb = jax.random.split(key, 3)
        bound = 1.0 / math.sqrt(fan_in)
        w = jax.random.uniform(kw, (fan_in, fan_out), jnp.float32, -bound, bound)
        b = jax.random.uniform(kb, (1, fan_out), jnp.float32, -bound, bound)
        params.append((w, b))
    return params


def _fuse_params(params):
    """Fuse encoder layer 3 (64->64, no activation) with decoder layer 0 (64->64).

    There is no nonlinearity between them, so they compose exactly:
      h@W3 + b3 -> (.)@W4 + b4  ==  h@(W3@W4) + (b3@W4 + b4)
    """
    (w3, b3), (w4, b4) = params[3], params[4]
    hp = jax.lax.Precision.HIGHEST
    w34 = jnp.dot(w3, w4, precision=hp)
    b34 = jnp.dot(b3, w4, precision=hp) + b4
    fused = list(params[:3]) + [(w34, b34)] + list(params[5:])
    acts = tuple(_ACTS[:3] + [_ACTS[4]] + _ACTS[5:])   # (T,T,T, T, T,T,F) - 7 layers
    return fused, acts


def _pack_padded_params(fused_params, compute_dtype):
    """Zero-pad the 9-wide feature dims to 128 lanes and cast weights."""
    packed = []
    n = len(fused_params)
    for li, (w, b) in enumerate(fused_params):
        if li == 0:
            # Pad input features 9 -> 128 with zero rows (x is zero-padded too).
            w = jnp.pad(w, ((0, LANE - w.shape[0]), (0, 0)))
        if li == n - 1:
            # Pad output features 9 -> 128 with zero columns / zero bias lanes.
            w = jnp.pad(w, ((0, 0), (0, LANE - w.shape[1])))
            b = jnp.pad(b, ((0, 0), (0, LANE - b.shape[1])))
        packed.append((w.astype(compute_dtype), b.astype(jnp.float32)))
    return packed


def _autoencoder_kernel(acts, x_ref, *refs):
    # refs = (w0, b0, w1, b1, ..., out_ref)
    out_ref = refs[-1]
    wb_refs = refs[:-1]

    h = x_ref[...].astype(jnp.float32)
    n_layers = len(wb_refs) // 2
    for li in range(n_layers):
        w = wb_refs[2 * li][...]
        b = wb_refs[2 * li + 1][...]
        # bf16 (or f32) MXU operands, f32 accumulation; bias/tanh stay in f32.
        h = jnp.dot(h.astype(w.dtype), w, preferred_element_type=jnp.float32) + b
        if acts[li]:
            h = jnp.tanh(h)
    out_ref[...] = h.astype(out_ref.dtype)


def encoder_decoder_forward(x, params, *, batch_tile=512,
                            compute_dtype=jnp.bfloat16):
    """Full fused forward pass. `params` are the original 8 (W, b) pairs."""
    B, F = x.shape
    assert F == INPUT_SIZE

    fused_params, acts = _fuse_params(params)
    packed = _pack_padded_params(fused_params, compute_dtype)

    # Tile the batch dimension only; pad ragged batches up to the tile.
    tile = min(batch_tile, _round_up(B, 8))
    B_pad = _round_up(B, tile)
    x_p = jnp.pad(x.astype(jnp.float32), ((0, B_pad - B), (0, LANE - F)))

    in_specs = [pl.BlockSpec((tile, LANE), lambda i: (i, 0))]
    flat_params = []
    for (w, b) in packed:
        in_specs.append(pl.BlockSpec(w.shape, lambda i: (0, 0)))
        in_specs.append(pl.BlockSpec(b.shape, lambda i: (0, 0)))
        flat_params.extend([w, b])

    out_spec = pl.BlockSpec((tile, LANE), lambda i: (i, 0))

    out = pl.pallas_call(
        functools.partial(_autoencoder_kernel, acts),
        out_shape=jax.ShapeDtypeStruct((B_pad, LANE), jnp.float32),
        grid_spec=pltpu.PrefetchScalarGridSpec(
            num_scalar_prefetch=0,
            grid=(B_pad // tile,),
            in_specs=in_specs,
            out_specs=out_spec,
        ),
        compiler_params=pltpu.CompilerParams(
            dimension_semantics=("parallel",),
            vmem_limit_bytes=32 * 1024 * 1024,
        ),
    )(x_p, *flat_params)

    return out[:B, :INPUT_SIZE]


def _reference_forward(x, params, acts=tuple(_ACTS)):
    h = x.astype(jnp.float32)
    for li, (w, b) in enumerate(params):
        h = h @ w + b
        if acts[li]:
            h = jnp.tanh(h)
    return h


if __name__ == "__main__":
    key = jax.random.PRNGKey(0)
    k_params, k_x = jax.random.split(key)

    params = init_params(k_params)

    batch = 1000  # intentionally ragged; padded to 1024 inside the wrapper
    x = jax.random.normal(k_x, (batch, INPUT_SIZE), jnp.float32)

    # Default (bf16-operand) fast path; tile=256 -> 4 grid steps (>=2 TCs busy on v7x).
    out_bf16 = jax.block_until_ready(
        encoder_decoder_forward(x, params, batch_tile=256))
    # Pure-f32 path for tight numerical validation.
    out_f32 = jax.block_until_ready(
        encoder_decoder_forward(x, params, batch_tile=256,
                                compute_dtype=jnp.float32))

    # References: original 8-layer chain and the fused 7-layer chain.
    ref = _reference_forward(x, params)
    fused_params, fused_acts = _fuse_params(params)
    ref_fused = _reference_forward(x, fused_params, fused_acts)

    assert out_bf16.shape == (batch, INPUT_SIZE)
    assert out_f32.shape == (batch, INPUT_SIZE)
    # Kernel (f32 path) vs. same-math reference: tight.
    assert jnp.allclose(out_f32, ref_fused, atol=1e-3, rtol=1e-3), "f32 kernel mismatch"
    # Fusion preserves the original module's semantics.
    assert jnp.allclose(out_f32, ref, atol=2e-2, rtol=2e-2), "fusion changed semantics"
    # bf16-operand fast path sanity check against the f32 reference.
    assert jnp.allclose(out_bf16, ref, atol=1e-1, rtol=1e-1), "bf16 kernel mismatch"

    print("KERNEL_OK")
</pallas_src>

<mosaic_0001>
module attributes {stable_mosaic.version = 11 : i64} {
  func.func @_autoencoder_kernel(%arg0: i32, %arg1: memref<256x128xf32, #tpu.memory_space<vmem>>, %arg2: memref<128x256xbf16, #tpu.memory_space<vmem>>, %arg3: memref<1x256xf32, #tpu.memory_space<vmem>>, %arg4: memref<256x128xbf16, #tpu.memory_space<vmem>>, %arg5: memref<1x128xf32, #tpu.memory_space<vmem>>, %arg6: memref<128x64xbf16, #tpu.memory_space<vmem>>, %arg7: memref<1x64xf32, #tpu.memory_space<vmem>>, %arg8: memref<64x64xbf16, #tpu.memory_space<vmem>>, %arg9: memref<1x64xf32, #tpu.memory_space<vmem>>, %arg10: memref<64x128xbf16, #tpu.memory_space<vmem>>, %arg11: memref<1x128xf32, #tpu.memory_space<vmem>>, %arg12: memref<128x256xbf16, #tpu.memory_space<vmem>>, %arg13: memref<1x256xf32, #tpu.memory_space<vmem>>, %arg14: memref<256x128xbf16, #tpu.memory_space<vmem>>, %arg15: memref<1x128xf32, #tpu.memory_space<vmem>>, %arg16: memref<256x128xf32, #tpu.memory_space<vmem>>) attributes {dimension_semantics = [#tpu.dimension_semantics<parallel>], iteration_bounds = array<i64: 4>, scalar_prefetch = 0 : i64, scratch_operands = 0 : i64, tpu.core_type = #tpu.core_type<tc>, window_params = [{transform_indices = @transform_0, window_bounds = array<i64: 256, 128>}, {pipeline_mode = #tpu.pipeline_mode<synchronous>, transform_indices = @transform_1, window_bounds = array<i64: 128, 256>}, {pipeline_mode = #tpu.pipeline_mode<synchronous>, transform_indices = @transform_2, window_bounds = array<i64: 1, 256>}, {pipeline_mode = #tpu.pipeline_mode<synchronous>, transform_indices = @transform_3, window_bounds = array<i64: 256, 128>}, {pipeline_mode = #tpu.pipeline_mode<synchronous>, transform_indices = @transform_4, window_bounds = array<i64: 1, 128>}, {pipeline_mode = #tpu.pipeline_mode<synchronous>, transform_indices = @transform_5, window_bounds = array<i64: 128, 64>}, {pipeline_mode = #tpu.pipeline_mode<synchronous>, transform_indices = @transform_6, window_bounds = array<i64: 1, 64>}, {pipeline_mode = #tpu.pipeline_mode<synchronous>, transform_indices = @transform_7, window_bounds = array<i64: 64, 64>}, {pipeline_mode = #tpu.pipeline_mode<synchronous>, transform_indices = @transform_8, window_bounds = array<i64: 1, 64>}, {pipeline_mode = #tpu.pipeline_mode<synchronous>, transform_indices = @transform_9, window_bounds = array<i64: 64, 128>}, {pipeline_mode = #tpu.pipeline_mode<synchronous>, transform_indices = @transform_10, window_bounds = array<i64: 1, 128>}, {pipeline_mode = #tpu.pipeline_mode<synchronous>, transform_indices = @transform_11, window_bounds = array<i64: 128, 256>}, {pipeline_mode = #tpu.pipeline_mode<synchronous>, transform_indices = @transform_12, window_bounds = array<i64: 1, 256>}, {pipeline_mode = #tpu.pipeline_mode<synchronous>, transform_indices = @transform_13, window_bounds = array<i64: 256, 128>}, {pipeline_mode = #tpu.pipeline_mode<synchronous>, transform_indices = @transform_14, window_bounds = array<i64: 1, 128>}, {transform_indices = @transform_15, window_bounds = array<i64: 256, 128>}]} {
    %c0 = arith.constant 0 : index
    %c0_0 = arith.constant 0 : index
    %0 = vector.load %arg1[%c0, %c0_0] : memref<256x128xf32, #tpu.memory_space<vmem>>, vector<256x128xf32>
    %c0_1 = arith.constant 0 : index
    %c0_2 = arith.constant 0 : index
    %1 = vector.load %arg2[%c0_1, %c0_2] : memref<128x256xbf16, #tpu.memory_space<vmem>>, vector<128x256xbf16>
    %c0_3 = arith.constant 0 : index
    %c0_4 = arith.constant 0 : index
    %2 = vector.load %arg3[%c0_3, %c0_4] : memref<1x256xf32, #tpu.memory_space<vmem>>, vector<1x256xf32>
    %3 = arith.truncf %0 : vector<256x128xf32> to vector<256x128xbf16>
    %cst = arith.constant dense<0.000000e+00> : vector<256x256xf32>
    %4 = tpu.matmul %3, %1, %cst {dimension_numbers = #tpu.dot_dimension_numbers<[1], [0], [0], [1], [0, 0, 1, 1], [], []>} : vector<256x128xbf16>, vector<128x256xbf16>, vector<256x256xf32> -> vector<256x256xf32>
    %5 = vector.broadcast %2 : vector<1x256xf32> to vector<256x256xf32>
    %6 = arith.addf %4, %5 : vector<256x256xf32>
    %7 = math.tanh %6 : vector<256x256xf32>
    %c0_5 = arith.constant 0 : index
    %c0_6 = arith.constant 0 : index
    %8 = vector.load %arg4[%c0_5, %c0_6] : memref<256x128xbf16, #tpu.memory_space<vmem>>, vector<256x128xbf16>
    %c0_7 = arith.constant 0 : index
    %c0_8 = arith.constant 0 : index
    %9 = vector.load %arg5[%c0_7, %c0_8] : memref<1x128xf32, #tpu.memory_space<vmem>>, vector<1x128xf32>
    %10 = arith.truncf %7 : vector<256x256xf32> to vector<256x256xbf16>
    %cst_9 = arith.constant dense<0.000000e+00> : vector<256x128xf32>
    %11 = tpu.matmul %10, %8, %cst_9 {dimension_numbers = #tpu.dot_dimension_numbers<[1], [0], [0], [1], [0, 0, 1, 1], [], []>} : vector<256x256xbf16>, vector<256x128xbf16>, vector<256x128xf32> -> vector<256x128xf32>
    %12 = vector.broadcast %9 : vector<1x128xf32> to vector<256x128xf32>
    %13 = arith.addf %11, %12 : vector<256x128xf32>
    %14 = math.tanh %13 : vector<256x128xf32>
    %c0_10 = arith.constant 0 : index
    %c0_11 = arith.constant 0 : index
    %15 = vector.load %arg6[%c0_10, %c0_11] : memref<128x64xbf16, #tpu.memory_space<vmem>>, vector<128x64xbf16>
    %c0_12 = arith.constant 0 : index
    %c0_13 = arith.constant 0 : index
    %16 = vector.load %arg7[%c0_12, %c0_13] : memref<1x64xf32, #tpu.memory_space<vmem>>, vector<1x64xf32>
    %17 = arith.truncf %14 : vector<256x128xf32> to vector<256x128xbf16>
    %cst_14 = arith.constant dense<0.000000e+00> : vector<256x64xf32>
    %18 = tpu.matmul %17, %15, %cst_14 {dimension_numbers = #tpu.dot_dimension_numbers<[1], [0], [0], [1], [0, 0, 1, 1], [], []>} : vector<256x128xbf16>, vector<128x64xbf16>, vector<256x64xf32> -> vector<256x64xf32>
    %19 = vector.broadcast %16 : vector<1x64xf32> to vector<256x64xf32>
    %20 = arith.addf %18, %19 : vector<256x64xf32>
    %21 = math.tanh %20 : vector<256x64xf32>
    %c0_15 = arith.constant 0 : index
    %c0_16 = arith.constant 0 : index
    %22 = vector.load %arg8[%c0_15, %c0_16] : memref<64x64xbf16, #tpu.memory_space<vmem>>, vector<64x64xbf16>
    %c0_17 = arith.constant 0 : index
    %c0_18 = arith.constant 0 : index
    %23 = vector.load %arg9[%c0_17, %c0_18] : memref<1x64xf32, #tpu.memory_space<vmem>>, vector<1x64xf32>
    %24 = arith.truncf %21 : vector<256x64xf32> to vector<256x64xbf16>
    %cst_19 = arith.constant dense<0.000000e+00> : vector<256x64xf32>
    %25 = tpu.matmul %24, %22, %cst_19 {dimension_numbers = #tpu.dot_dimension_numbers<[1], [0], [0], [1], [0, 0, 1, 1], [], []>} : vector<256x64xbf16>, vector<64x64xbf16>, vector<256x64xf32> -> vector<256x64xf32>
    %26 = vector.broadcast %23 : vector<1x64xf32> to vector<256x64xf32>
    %27 = arith.addf %25, %26 : vector<256x64xf32>
    %28 = math.tanh %27 : vector<256x64xf32>
    %c0_20 = arith.constant 0 : index
    %c0_21 = arith.constant 0 : index
    %29 = vector.load %arg10[%c0_20, %c0_21] : memref<64x128xbf16, #tpu.memory_space<vmem>>, vector<64x128xbf16>
    %c0_22 = arith.constant 0 : index
    %c0_23 = arith.constant 0 : index
    %30 = vector.load %arg11[%c0_22, %c0_23] : memref<1x128xf32, #tpu.memory_space<vmem>>, vector<1x128xf32>
    %31 = arith.truncf %28 : vector<256x64xf32> to vector<256x64xbf16>
    %cst_24 = arith.constant dense<0.000000e+00> : vector<256x128xf32>
    %32 = tpu.matmul %31, %29, %cst_24 {dimension_numbers = #tpu.dot_dimension_numbers<[1], [0], [0], [1], [0, 0, 1, 1], [], []>} : vector<256x64xbf16>, vector<64x128xbf16>, vector<256x128xf32> -> vector<256x128xf32>
    %33 = vector.broadcast %30 : vector<1x128xf32> to vector<256x128xf32>
    %34 = arith.addf %32, %33 : vector<256x128xf32>
    %35 = math.tanh %34 : vector<256x128xf32>
    %c0_25 = arith.constant 0 : index
    %c0_26 = arith.constant 0 : index
    %36 = vector.load %arg12[%c0_25, %c0_26] : memref<128x256xbf16, #tpu.memory_space<vmem>>, vector<128x256xbf16>
    %c0_27 = arith.constant 0 : index
    %c0_28 = arith.constant 0 : index
    %37 = vector.load %arg13[%c0_27, %c0_28] : memref<1x256xf32, #tpu.memory_space<vmem>>, vector<1x256xf32>
    %38 = arith.truncf %35 : vector<256x128xf32> to vector<256x128xbf16>
    %cst_29 = arith.constant dense<0.000000e+00> : vector<256x256xf32>
    %39 = tpu.matmul %38, %36, %cst_29 {dimension_numbers = #tpu.dot_dimension_numbers<[1], [0], [0], [1], [0, 0, 1, 1], [], []>} : vector<256x128xbf16>, vector<128x256xbf16>, vector<256x256xf32> -> vector<256x256xf32>
    %40 = vector.broadcast %37 : vector<1x256xf32> to vector<256x256xf32>
    %41 = arith.addf %39, %40 : vector<256x256xf32>
    %42 = math.tanh %41 : vector<256x256xf32>
    %c0_30 = arith.constant 0 : index
    %c0_31 = arith.constant 0 : index
    %43 = vector.load %arg14[%c0_30, %c0_31] : memref<256x128xbf16, #tpu.memory_space<vmem>>, vector<256x128xbf16>
    %c0_32 = arith.constant 0 : index
    %c0_33 = arith.constant 0 : index
    %44 = vector.load %arg15[%c0_32, %c0_33] : memref<1x128xf32, #tpu.memory_space<vmem>>, vector<1x128xf32>
    %45 = arith.truncf %42 : vector<256x256xf32> to vector<256x256xbf16>
    %cst_34 = arith.constant dense<0.000000e+00> : vector<256x128xf32>
    %46 = tpu.matmul %45, %43, %cst_34 {dimension_numbers = #tpu.dot_dimension_numbers<[1], [0], [0], [1], [0, 0, 1, 1], [], []>} : vector<256x256xbf16>, vector<256x128xbf16>, vector<256x128xf32> -> vector<256x128xf32>
    %47 = vector.broadcast %44 : vector<1x128xf32> to vector<256x128xf32>
    %48 = arith.addf %46, %47 : vector<256x128xf32>
    %c0_35 = arith.constant 0 : index
    %c0_36 = arith.constant 0 : index
    %49 = vector.load %arg16[%c0_35, %c0_36] : memref<256x128xf32, #tpu.memory_space<vmem>>, vector<256x128xf32>
    tpu.vector_store %arg16[%c0_35, %c0_36], %48 {strides = array<i32>} : memref<256x128xf32, #tpu.memory_space<vmem>>, vector<256x128xf32>,
    return
  }
  func.func @transform_0(%arg0: i32) -> (i32, i32) {
    %c0_i32 = arith.constant 0 : i32
    %c0_i32_0 = arith.constant 0 : i32
    return %arg0, %c0_i32 : i32, i32
  }
  func.func @transform_1(%arg0: i32) -> (i32, i32) {
    %c0_i32 = arith.constant 0 : i32
    %c0_i32_0 = arith.constant 0 : i32
    %c0_i32_1 = arith.constant 0 : i32
    return %c0_i32, %c0_i32_0 : i32, i32
  }
  func.func @transform_2(%arg0: i32) -> (i32, i32) {
    %c0_i32 = arith.constant 0 : i32
    %c0_i32_0 = arith.constant 0 : i32
    %c0_i32_1 = arith.constant 0 : i32
    return %c0_i32, %c0_i32_0 : i32, i32
  }
  func.func @transform_3(%arg0: i32) -> (i32, i32) {
    %c0_i32 = arith.constant 0 : i32
    %c0_i32_0 = arith.constant 0 : i32
    %c0_i32_1 = arith.constant 0 : i32
    return %c0_i32, %c0_i32_0 : i32, i32
  }
  func.func @transform_4(%arg0: i32) -> (i32, i32) {
    %c0_i32 = arith.constant 0 : i32
    %c0_i32_0 = arith.constant 0 : i32
    %c0_i32_1 = arith.constant 0 : i32
    return %c0_i32, %c0_i32_0 : i32, i32
  }
  func.func @transform_5(%arg0: i32) -> (i32, i32) {
    %c0_i32 = arith.constant 0 : i32
    %c0_i32_0 = arith.constant 0 : i32
    %c0_i32_1 = arith.constant 0 : i32
    return %c0_i32, %c0_i32_0 : i32, i32
  }
  func.func @transform_6(%arg0: i32) -> (i32, i32) {
    %c0_i32 = arith.constant 0 : i32
    %c0_i32_0 = arith.constant 0 : i32
    %c0_i32_1 = arith.constant 0 : i32
    return %c0_i32, %c0_i32_0 : i32, i32
  }
  func.func @transform_7(%arg0: i32) -> (i32, i32) {
    %c0_i32 = arith.constant 0 : i32
    %c0_i32_0 = arith.constant 0 : i32
    %c0_i32_1 = arith.constant 0 : i32
    return %c0_i32, %c0_i32_0 : i32, i32
  }
  func.func @transform_8(%arg0: i32) -> (i32, i32) {
    %c0_i32 = arith.constant 0 : i32
    %c0_i32_0 = arith.constant 0 : i32
    %c0_i32_1 = arith.constant 0 : i32
    return %c0_i32, %c0_i32_0 : i32, i32
  }
  func.func @transform_9(%arg0: i32) -> (i32, i32) {
    %c0_i32 = arith.constant 0 : i32
    %c0_i32_0 = arith.constant 0 : i32
    %c0_i32_1 = arith.constant 0 : i32
    return %c0_i32, %c0_i32_0 : i32, i32
  }
  func.func @transform_10(%arg0: i32) -> (i32, i32) {
    %c0_i32 = arith.constant 0 : i32
    %c0_i32_0 = arith.constant 0 : i32
    %c0_i32_1 = arith.constant 0 : i32
    return %c0_i32, %c0_i32_0 : i32, i32
  }
  func.func @transform_11(%arg0: i32) -> (i32, i32) {
    %c0_i32 = arith.constant 0 : i32
    %c0_i32_0 = arith.constant 0 : i32
    %c0_i32_1 = arith.constant 0 : i32
    return %c0_i32, %c0_i32_0 : i32, i32
  }
  func.func @transform_12(%arg0: i32) -> (i32, i32) {
    %c0_i32 = arith.constant 0 : i32
    %c0_i32_0 = arith.constant 0 : i32
    %c0_i32_1 = arith.constant 0 : i32
    return %c0_i32, %c0_i32_0 : i32, i32
  }
  func.func @transform_13(%arg0: i32) -> (i32, i32) {
    %c0_i32 = arith.constant 0 : i32
    %c0_i32_0 = arith.constant 0 : i32
    %c0_i32_1 = arith.constant 0 : i32
    return %c0_i32, %c0_i32_0 : i32, i32
  }
  func.func @transform_14(%arg0: i32) -> (i32, i32) {
    %c0_i32 = arith.constant 0 : i32
    %c0_i32_0 = arith.constant 0 : i32
    %c0_i32_1 = arith.constant 0 : i32
    return %c0_i32, %c0_i32_0 : i32, i32
  }
  func.func @transform_15(%arg0: i32) -> (i32, i32) {
    %c0_i32 = arith.constant 0 : i32
    %c0_i32_0 = arith.constant 0 : i32
    return %arg0, %c0_i32 : i32, i32
  }
}

</mosaic_0001>

<llo_original>
// kernel: tpu_custom_call.1
$region0: #{tpu_custom_call.1}
  #allocation0 [shape = 'u32[]', space=smem, size = 0x4, offset = 0x4, fixed_abs, tag = 'smem constant byte address 0x4 - core index']
  #allocation1 [shape = 'u32[144,128]{1,0:T(1,128)}', space=vmem, size = 0x12000, scoped, tag = 'internal scratch']
  %s0 = inlined_call_operand.hbm [shape: f32[1024,128], index: 0, kind: input, shape index: {}]
  %s1 = inlined_call_operand.hbm [shape: bf16[128,256], index: 1, kind: input, shape index: {}]
  %s2 = inlined_call_operand.vmem [shape: f32[1,256], index: 2, kind: input, shape index: {}]
  %s3 = inlined_call_operand.hbm [shape: bf16[256,128], index: 3, kind: input, shape index: {}]
  %s4 = inlined_call_operand.vmem [shape: f32[1,128], index: 4, kind: input, shape index: {}]
  %s5 = inlined_call_operand.vmem [shape: bf16[128,64], index: 5, kind: input, shape index: {}]
  %s6 = inlined_call_operand.vmem [shape: f32[1,64], index: 6, kind: input, shape index: {}]
  %s7 = inlined_call_operand.vmem [shape: bf16[64,64], index: 7, kind: input, shape index: {}]
  %s8 = inlined_call_operand.vmem [shape: f32[1,64], index: 8, kind: input, shape index: {}]
  %s9 = inlined_call_operand.vmem [shape: bf16[64,128], index: 9, kind: input, shape index: {}]
  %s10 = inlined_call_operand.vmem [shape: f32[1,128], index: 10, kind: input, shape index: {}]
  %s11 = inlined_call_operand.hbm [shape: bf16[128,256], index: 11, kind: input, shape index: {}]
  %s12 = inlined_call_operand.vmem [shape: f32[1,256], index: 12, kind: input, shape index: {}]
  %s13 = inlined_call_operand.hbm [shape: bf16[256,128], index: 13, kind: input, shape index: {}]
  %s14 = inlined_call_operand.vmem [shape: f32[1,128], index: 14, kind: input, shape index: {}]
  %s15 = inlined_call_operand.hbm [shape: f32[1024,128], index: 15, kind: output, shape index: {}]
  %s16 = sld [smem:[#allocation0]]
  $region113: #{tpu_custom_call.1} parent=0
    _
  %s18 = ssub.s32 1, %s16
  %s19 = scalar_select 0, %s18, %s16
  $region1: #{tpu_custom_call.1} parent=0
    #allocation2 [shape = 'u8[262144]{0}', space=vmem, size = 0x40000, scoped, tag = 'input window, operand 0']
    #allocation3 [shape = 's32[2]{0}', space=sflag, size = 0x8, scoped, tag = 'scoped memory for tpu_custom_call.1']
    #allocation4 [shape = 's32[2]{0}', space=sflag, size = 0x8, scoped, tag = 'scoped memory for tpu_custom_call.1']
    #allocation5 [shape = 'u8[65536]{0}', space=vmem, size = 0x10000, scoped, tag = 'input window, operand 1, single buffered']
    #allocation6 [shape = 's32[1]{0}', space=sflag, size = 0x4, scoped, tag = 'scoped memory for tpu_custom_call.1']
    #allocation7 [shape = 'u8[65536]{0}', space=vmem, size = 0x10000, scoped, tag = 'input window, operand 3, single buffered']
    #allocation8 [shape = 'u8[65536]{0}', space=vmem, size = 0x10000, scoped, tag = 'input window, operand 11, single buffered']
    #allocation9 [shape = 's32[1]{0}', space=sflag, size = 0x4, scoped, tag = 'scoped memory for tpu_custom_call.1']
    #allocation10 [shape = 'u8[65536]{0}', space=vmem, size = 0x10000, scoped, tag = 'input window, operand 13, single buffered']
    #allocation11 [shape = 'u8[262144]{0}', space=vmem, size = 0x40000, scoped, tag = 'output window, operand 0']
    %20 = vsyncpa [#allocation3], 0
    %s21 = scalar_lea.sflag [#allocation3], 1
    %22 = vsyncpa %s21, 0
    %23 = vsyncpa [#allocation6], 0
    %24 = vsyncpa [#allocation9], 0
    %25 = vsyncpa [#allocation4], 0
    %s26 = scalar_lea.sflag [#allocation4], 1
    %27 = vsyncpa %s26, 0
    loop: start=0, step=1, limit=6
    $region2: #{tpu_custom_call.1} parent=1 // loop_pre_header
      _
    $region3: #{tpu_custom_call.1} parent=1 // loop_header
      %s29 = sphi 0, %s33
      %p30 = scmp.ge.s32.totalorder %s29, 6
      %s39 = sphi 0, %s41
      %s42 = sphi 0, %s39
      %s43 = sphi 0, %s42
      %s59 = sphi 0, %s43
      %s63 = sphi 0, %s63
      %s65 = sphi 0, %s63
      %s66 = sphi 0, %s65
      %s80 = sphi 0, %s66
      %s84 = sphi 0, %s84
      %s86 = sphi 0, %s84
      %s87 = sphi 0, %s86
      %s101 = sphi 0, %s87
      %s105 = sphi 0, %s105
      %s107 = sphi 0, %s105
      %s108 = sphi 0, %s107
      %s122 = sphi 0, %s108
      %s126 = sphi 0, %s126
      %s128 = sphi 0, %s126
      %s129 = sphi 0, %s128
      %s143 = sphi 0, %s129
      %s147 = sphi 0, %s147
      %s149 = sphi 0, %s147
      %s150 = sphi 0, %s149
      %s164 = sphi 0, %s150
      %s168 = sphi 0, %s168
      %s170 = sphi 0, %s168
      %s171 = sphi 0, %s170
      %s185 = sphi 0, %s171
      %s189 = sphi 0, %s189
      %s191 = sphi 0, %s189
      %s192 = sphi 0, %s191
      %s206 = sphi 0, %s192
      %s210 = sphi 0, %s210
      %s212 = sphi 0, %s210
      %s213 = sphi 0, %s212
      %s227 = sphi 0, %s213
      %s231 = sphi 0, %s231
      %s233 = sphi 0, %s231
      %s234 = sphi 0, %s233
      %s248 = sphi 0, %s234
      %s252 = sphi 0, %s252
      %s254 = sphi 0, %s252
      %s255 = sphi 0, %s254
      %s269 = sphi 0, %s255
      %s273 = sphi 0, %s273
      %s275 = sphi 0, %s273
      %s276 = sphi 0, %s275
      %s290 = sphi 0, %s276
      %s294 = sphi 0, %s294
      %s296 = sphi 0, %s294
      %s297 = sphi 0, %s296
      %s311 = sphi 0, %s297
      %s315 = sphi 0, %s315
      %s317 = sphi 0, %s315
      %s318 = sphi 0, %s317
      %s332 = sphi 0, %s318
      %s336 = sphi 0, %s336
      %s338 = sphi 0, %s336
      %s339 = sphi 0, %s338
      %s353 = sphi 0, %s339
      %s359 = sphi 0, %s361
      %s362 = sphi 0, %s359
      %s363 = sphi 0, %s362
      %s379 = sphi 0, %s363
    $region4: #{tpu_custom_call.1} parent=1 // loop_header_branch
      %32 = sbr.rel (%p30) target = $region8
    $region5: #{tpu_custom_call.1} parent=1 // loop_body
      %s34 = ssub.s32 %s29, 1
      %s35 = ssub.s32 %s29, 2
      %s36 = sadd.s32 %s29, 1
      %s37 = ssub.s32 %s29, %s36
      %p38 = scmp.eq.s32.totalorder %s37, 0
      %s40 = sadd.s32 %s39, 1
      %s41 = scalar_select %p38, %s39, %s40
      %p44 = pneg %p38
      %p45 = scmp.eq.s32.totalorder %s29, 3
      %p46 = por %p44, %p45
      %p47 = scmp.ne.s32.totalorder %s39, %s42
      %p48 = scmp.eq.s32.totalorder %s29, 0
      %p49 = por %p47, %p48
      %p50 = scmp.ne.s32.totalorder %s39, %s42
      %p51 = scmp.eq.s32.totalorder %s34, 3
      %p52 = por %p50, %p51
      %p53 = scmp.ne.s32.totalorder %s42, %s43
      %p54 = scmp.eq.s32.totalorder %s34, 0
      %p55 = por %p53, %p54
      %p56 = scmp.ne.s32.totalorder %s42, %s43
      %p57 = scmp.eq.s32.totalorder %s35, 3
      %p58 = por %p56, %p57
      %p60 = scmp.ne.s32.totalorder %s43, %s59
      %p61 = scmp.eq.s32.totalorder %s35, 0
      %p62 = por %p60, %p61
      %s64 = sadd.s32 %s63, 1
      %p67 = scmp.eq.s32.totalorder %s29, 3
      %p68 = scmp.ne.s32.totalorder %s63, %s65
      %p69 = scmp.eq.s32.totalorder %s29, 0
      %p70 = por %p68, %p69
      %p71 = scmp.ne.s32.totalorder %s63, %s65
      %p72 = scmp.eq.s32.totalorder %s34, 3
      %p73 = por %p71, %p72
      %p74 = scmp.ne.s32.totalorder %s65, %s66
      %p75 = scmp.eq.s32.totalorder %s34, 0
      %p76 = por %p74, %p75
      %p77 = scmp.ne.s32.totalorder %s65, %s66
      %p78 = scmp.eq.s32.totalorder %s35, 3
      %p79 = por %p77, %p78
      %p81 = scmp.ne.s32.totalorder %s66, %s80
      %p82 = scmp.eq.s32.totalorder %s35, 0
      %p83 = por %p81, %p82
      %s85 = sadd.s32 %s84, 1
      %p88 = scmp.eq.s32.totalorder %s29, 3
      %p89 = scmp.ne.s32.totalorder %s84, %s86
      %p90 = scmp.eq.s32.totalorder %s29, 0
      %p91 = por %p89, %p90
      %p92 = scmp.ne.s32.totalorder %s84, %s86
      %p93 = scmp.eq.s32.totalorder %s34, 3
      %p94 = por %p92, %p93
      %p95 = scmp.ne.s32.totalorder %s86, %s87
      %p96 = scmp.eq.s32.totalorder %s34, 0
      %p97 = por %p95, %p96
      %p98 = scmp.ne.s32.totalorder %s86, %s87
      %p99 = scmp.eq.s32.totalorder %s35, 3
      %p100 = por %p98, %p99
      %p102 = scmp.ne.s32.totalorder %s87, %s101
      %p103 = scmp.eq.s32.totalorder %s35, 0
      %p104 = por %p102, %p103
      %s106 = sadd.s32 %s105, 1
      %p109 = scmp.eq.s32.totalorder %s29, 3
      %p110 = scmp.ne.s32.totalorder %s105, %s107
      %p111 = scmp.eq.s32.totalorder %s29, 0
      %p112 = por %p110, %p111
      %p113 = scmp.ne.s32.totalorder %s105, %s107
      %p114 = scmp.eq.s32.totalorder %s34, 3
      %p115 = por %p113, %p114
      %p116 = scmp.ne.s32.totalorder %s107, %s108
      %p117 = scmp.eq.s32.totalorder %s34, 0
      %p118 = por %p116, %p117
      %p119 = scmp.ne.s32.totalorder %s107, %s108
      %p120 = scmp.eq.s32.totalorder %s35, 3
      %p121 = por %p119, %p120
      %p123 = scmp.ne.s32.totalorder %s108, %s122
      %p124 = scmp.eq.s32.totalorder %s35, 0
      %p125 = por %p123, %p124
      %s127 = sadd.s32 %s126, 1
      %p130 = scmp.eq.s32.totalorder %s29, 3
      %p131 = scmp.ne.s32.totalorder %s126, %s128
      %p132 = scmp.eq.s32.totalorder %s29, 0
      %p133 = por %p131, %p132
      %p134 = scmp.ne.s32.totalorder %s126, %s128
      %p135 = scmp.eq.s32.totalorder %s34, 3
      %p136 = por %p134, %p135
      %p137 = scmp.ne.s32.totalorder %s128, %s129
      %p138 = scmp.eq.s32.totalorder %s34, 0
      %p139 = por %p137, %p138
      %p140 = scmp.ne.s32.totalorder %s128, %s129
      %p141 = scmp.eq.s32.totalorder %s35, 3
      %p142 = por %p140, %p141
      %p144 = scmp.ne.s32.totalorder %s129, %s143
      %p145 = scmp.eq.s32.totalorder %s35, 0
      %p146 = por %p144, %p145
      %s148 = sadd.s32 %s147, 1
      %p151 = scmp.eq.s32.totalorder %s29, 3
      %p152 = scmp.ne.s32.totalorder %s147, %s149
      %p153 = scmp.eq.s32.totalorder %s29, 0
      %p154 = por %p152, %p153
      %p155 = scmp.ne.s32.totalorder %s147, %s149
      %p156 = scmp.eq.s32.totalorder %s34, 3
      %p157 = por %p155, %p156
      %p158 = scmp.ne.s32.totalorder %s149, %s150
      %p159 = scmp.eq.s32.totalorder %s34, 0
      %p160 = por %p158, %p159
      %p161 = scmp.ne.s32.totalorder %s149, %s150
      %p162 = scmp.eq.s32.totalorder %s35, 3
      %p163 = por %p161, %p162
      %p165 = scmp.ne.s32.totalorder %s150, %s164
      %p166 = scmp.eq.s32.totalorder %s35, 0
      %p167 = por %p165, %p166
      %s169 = sadd.s32 %s168, 1
      %p172 = scmp.eq.s32.totalorder %s29, 3
      %p173 = scmp.ne.s32.totalorder %s168, %s170
      %p174 = scmp.eq.s32.totalorder %s29, 0
      %p175 = por %p173, %p174
      %p176 = scmp.ne.s32.totalorder %s168, %s170
      %p177 = scmp.eq.s32.totalorder %s34, 3
      %p178 = por %p176, %p177
      %p179 = scmp.ne.s32.totalorder %s170, %s171
      %p180 = scmp.eq.s32.totalorder %s34, 0
      %p181 = por %p179, %p180
      %p182 = scmp.ne.s32.totalorder %s170, %s171
      %p183 = scmp.eq.s32.totalorder %s35, 3
      %p184 = por %p182, %p183
      %p186 = scmp.ne.s32.totalorder %s171, %s185
      %p187 = scmp.eq.s32.totalorder %s35, 0
      %p188 = por %p186, %p187
      %s190 = sadd.s32 %s189, 1
      %p193 = scmp.eq.s32.totalorder %s29, 3
      %p194 = scmp.ne.s32.totalorder %s189, %s191
      %p195 = scmp.eq.s32.totalorder %s29, 0
      %p196 = por %p194, %p195
      %p197 = scmp.ne.s32.totalorder %s189, %s191
      %p198 = scmp.eq.s32.totalorder %s34, 3
      %p199 = por %p197, %p198
      %p200 = scmp.ne.s32.totalorder %s191, %s192
      %p201 = scmp.eq.s32.totalorder %s34, 0
      %p202 = por %p200, %p201
      %p203 = scmp.ne.s32.totalorder %s191, %s192
      %p204 = scmp.eq.s32.totalorder %s35, 3
      %p205 = por %p203, %p204
      %p207 = scmp.ne.s32.totalorder %s192, %s206
      %p208 = scmp.eq.s32.totalorder %s35, 0
      %p209 = por %p207, %p208
      %s211 = sadd.s32 %s210, 1
      %p214 = scmp.eq.s32.totalorder %s29, 3
      %p215 = scmp.ne.s32.totalorder %s210, %s212
      %p216 = scmp.eq.s32.totalorder %s29, 0
      %p217 = por %p215, %p216
      %p218 = scmp.ne.s32.totalorder %s210, %s212
      %p219 = scmp.eq.s32.totalorder %s34, 3
      %p220 = por %p218, %p219
      %p221 = scmp.ne.s32.totalorder %s212, %s213
      %p222 = scmp.eq.s32.totalorder %s34, 0
      %p223 = por %p221, %p222
      %p224 = scmp.ne.s32.totalorder %s212, %s213
      %p225 = scmp.eq.s32.totalorder %s35, 3
      %p226 = por %p224, %p225
      %p228 = scmp.ne.s32.totalorder %s213, %s227
      %p229 = scmp.eq.s32.totalorder %s35, 0
      %p230 = por %p228, %p229
      %s232 = sadd.s32 %s231, 1
      %p235 = scmp.eq.s32.totalorder %s29, 3
      %p236 = scmp.ne.s32.totalorder %s231, %s233
      %p237 = scmp.eq.s32.totalorder %s29, 0
      %p238 = por %p236, %p237
      %p239 = scmp.ne.s32.totalorder %s231, %s233
      %p240 = scmp.eq.s32.totalorder %s34, 3
      %p241 = por %p239, %p240
      %p242 = scmp.ne.s32.totalorder %s233, %s234
      %p243 = scmp.eq.s32.totalorder %s34, 0
      %p244 = por %p242, %p243
      %p245 = scmp.ne.s32.totalorder %s233, %s234
      %p246 = scmp.eq.s32.totalorder %s35, 3
      %p247 = por %p245, %p246
      %p249 = scmp.ne.s32.totalorder %s234, %s248
      %p250 = scmp.eq.s32.totalorder %s35, 0
      %p251 = por %p249, %p250
      %s253 = sadd.s32 %s252, 1
      %p256 = scmp.eq.s32.totalorder %s29, 3
      %p257 = scmp.ne.s32.totalorder %s252, %s254
      %p258 = scmp.eq.s32.totalorder %s29, 0
      %p259 = por %p257, %p258
      %p260 = scmp.ne.s32.totalorder %s252, %s254
      %p261 = scmp.eq.s32.totalorder %s34, 3
      %p262 = por %p260, %p261
      %p263 = scmp.ne.s32.totalorder %s254, %s255
      %p264 = scmp.eq.s32.totalorder %s34, 0
      %p265 = por %p263, %p264
      %p266 = scmp.ne.s32.totalorder %s254, %s255
      %p267 = scmp.eq.s32.totalorder %s35, 3
      %p268 = por %p266, %p267
      %p270 = scmp.ne.s32.totalorder %s255, %s269
      %p271 = scmp.eq.s32.totalorder %s35, 0
      %p272 = por %p270, %p271
      %s274 = sadd.s32 %s273, 1
      %p277 = scmp.eq.s32.totalorder %s29, 3
      %p278 = scmp.ne.s32.totalorder %s273, %s275
      %p279 = scmp.eq.s32.totalorder %s29, 0
      %p280 = por %p278, %p279
      %p281 = scmp.ne.s32.totalorder %s273, %s275
      %p282 = scmp.eq.s32.totalorder %s34, 3
      %p283 = por %p281, %p282
      %p284 = scmp.ne.s32.totalorder %s275, %s276
      %p285 = scmp.eq.s32.totalorder %s34, 0
      %p286 = por %p284, %p285
      %p287 = scmp.ne.s32.totalorder %s275, %s276
      %p288 = scmp.eq.s32.totalorder %s35, 3
      %p289 = por %p287, %p288
      %p291 = scmp.ne.s32.totalorder %s276, %s290
      %p292 = scmp.eq.s32.totalorder %s35, 0
      %p293 = por %p291, %p292
      %s295 = sadd.s32 %s294, 1
      %p298 = scmp.eq.s32.totalorder %s29, 3
      %p299 = scmp.ne.s32.totalorder %s294, %s296
      %p300 = scmp.eq.s32.totalorder %s29, 0
      %p301 = por %p299, %p300
      %p302 = scmp.ne.s32.totalorder %s294, %s296
      %p303 = scmp.eq.s32.totalorder %s34, 3
      %p304 = por %p302, %p303
      %p305 = scmp.ne.s32.totalorder %s296, %s297
      %p306 = scmp.eq.s32.totalorder %s34, 0
      %p307 = por %p305, %p306
      %p308 = scmp.ne.s32.totalorder %s296, %s297
      %p309 = scmp.eq.s32.totalorder %s35, 3
      %p310 = por %p308, %p309
      %p312 = scmp.ne.s32.totalorder %s297, %s311
      %p313 = scmp.eq.s32.totalorder %s35, 0
      %p314 = por %p312, %p313
      %s316 = sadd.s32 %s315, 1
      %p319 = scmp.eq.s32.totalorder %s29, 3
      %p320 = scmp.ne.s32.totalorder %s315, %s317
      %p321 = scmp.eq.s32.totalorder %s29, 0
      %p322 = por %p320, %p321
      %p323 = scmp.ne.s32.totalorder %s315, %s317
      %p324 = scmp.eq.s32.totalorder %s34, 3
      %p325 = por %p323, %p324
      %p326 = scmp.ne.s32.totalorder %s317, %s318
      %p327 = scmp.eq.s32.totalorder %s34, 0
      %p328 = por %p326, %p327
      %p329 = scmp.ne.s32.totalorder %s317, %s318
      %p330 = scmp.eq.s32.totalorder %s35, 3
      %p331 = por %p329, %p330
      %p333 = scmp.ne.s32.totalorder %s318, %s332
      %p334 = scmp.eq.s32.totalorder %s35, 0
      %p335 = por %p333, %p334
      %s337 = sadd.s32 %s336, 1
      %p340 = scmp.eq.s32.totalorder %s29, 3
      %p341 = scmp.ne.s32.totalorder %s336, %s338
      %p342 = scmp.eq.s32.totalorder %s29, 0
      %p343 = por %p341, %p342
      %p344 = scmp.ne.s32.totalorder %s336, %s338
      %p345 = scmp.eq.s32.totalorder %s34, 3
      %p346 = por %p344, %p345
      %p347 = scmp.ne.s32.totalorder %s338, %s339
      %p348 = scmp.eq.s32.totalorder %s34, 0
      %p349 = por %p347, %p348
      %p350 = scmp.ne.s32.totalorder %s338, %s339
      %p351 = scmp.eq.s32.totalorder %s35, 3
      %p352 = por %p350, %p351
      %p354 = scmp.ne.s32.totalorder %s339, %s353
      %p355 = scmp.eq.s32.totalorder %s35, 0
      %p356 = por %p354, %p355
      %s357 = ssub.s32 %s29, %s36
      %p358 = scmp.eq.s32.totalorder %s357, 0
      %s360 = sadd.s32 %s359, 1
      %s361 = scalar_select %p358, %s359, %s360
      %p364 = pneg %p358
      %p365 = scmp.eq.s32.totalorder %s29, 3
      %p366 = por %p364, %p365
      %p367 = scmp.ne.s32.totalorder %s359, %s362
      %p368 = scmp.eq.s32.totalorder %s29, 0
      %p369 = por %p367, %p368
      %p370 = scmp.ne.s32.totalorder %s359, %s362
      %p371 = scmp.eq.s32.totalorder %s34, 3
      %p372 = por %p370, %p371
      %p373 = scmp.ne.s32.totalorder %s362, %s363
      %p374 = scmp.eq.s32.totalorder %s34, 0
      %p375 = por %p373, %p374
      %p376 = scmp.ne.s32.totalorder %s362, %s363
      %p377 = scmp.eq.s32.totalorder %s35, 3
      %p378 = por %p376, %p377
      %p380 = scmp.ne.s32.totalorder %s363, %s379
      %p381 = scmp.eq.s32.totalorder %s35, 0
      %p382 = por %p380, %p381
      %p383 = scmp.le.s32.totalorder 1, %s29
      %p384 = scmp.lt.s32.totalorder %s29, 5
      %p385 = pnand %p383, %p384
      %p386 = pneg %p385
      // Predicated region
      $region9: #{tpu_custom_call.1} parent=5 // pred_check
        _
      $region10: #{tpu_custom_call.1} parent=5 // pred_check_branch
        %388 = sbr.rel (%p385) target = $region12
      $region11: #{tpu_custom_call.1} parent=5 // pred_region
        %s389 = ssub.s32 %s29, 1
        // Predicated region
        $region13: #{tpu_custom_call.1} parent=11 // pred_check
          %p390 = pneg %p76
        $region14: #{tpu_custom_call.1} parent=11 // pred_check_branch
          %392 = sbr.rel (%p390) target = $region16
        $region15: #{tpu_custom_call.1} parent=11 // pred_region
          %s394 = ssub.s32 2048, 2048
          %395 = vsyncadd [#allocation6], %s394
          %s396 = sshll.u32 [#allocation5], 4
          %s397 = int_to_ptr.vmem [resolvable:$true] %s396
          %402 = dma.hbm_to_vmem [thread:$0]  %s1, 2048, %s397, [#allocation6], 128, 128, 8
        $region16: #{tpu_custom_call.1} parent=11 // pred_fallthru
          _
        // Predicated region
        $region17: #{tpu_custom_call.1} parent=11 // pred_check
          %p403 = pneg %p97
        $region18: #{tpu_custom_call.1} parent=11 // pred_check_branch
          %405 = sbr.rel (%p403) target = $region20
        $region19: #{tpu_custom_call.1} parent=11 // pred_region
          _
        $region20: #{tpu_custom_call.1} parent=11 // pred_fallthru
          _
        // Predicated region
        $region21: #{tpu_custom_call.1} parent=11 // pred_check
          %p406 = pneg %p118
        $region22: #{tpu_custom_call.1} parent=11 // pred_check_branch
          %408 = sbr.rel (%p406) target = $region24
        $region23: #{tpu_custom_call.1} parent=11 // pred_region
          %s410 = ssub.s32 2048, 2048
          %411 = vsyncadd [#allocation6], %s410
          %s412 = sshll.u32 [#allocation7], 4
          %s413 = int_to_ptr.vmem [resolvable:$true] %s412
          %418 = dma.hbm_to_vmem [thread:$0]  %s3, 2048, %s413, [#allocation6], 64, 64, 4
        $region24: #{tpu_custom_call.1} parent=11 // pred_fallthru
          _
        // Predicated region
        $region25: #{tpu_custom_call.1} parent=11 // pred_check
          %p419 = pneg %p139
        $region26: #{tpu_custom_call.1} parent=11 // pred_check_branch
          %421 = sbr.rel (%p419) target = $region28
        $region27: #{tpu_custom_call.1} parent=11 // pred_region
          _
        $region28: #{tpu_custom_call.1} parent=11 // pred_fallthru
          _
        // Predicated region
        $region29: #{tpu_custom_call.1} parent=11 // pred_check
          %p422 = pneg %p160
        $region30: #{tpu_custom_call.1} parent=11 // pred_check_branch
          %424 = sbr.rel (%p422) target = $region32
        $region31: #{tpu_custom_call.1} parent=11 // pred_region
          _
        $region32: #{tpu_custom_call.1} parent=11 // pred_fallthru
          _
        // Predicated region
        $region33: #{tpu_custom_call.1} parent=11 // pred_check
          %p425 = pneg %p181
        $region34: #{tpu_custom_call.1} parent=11 // pred_check_branch
          %427 = sbr.rel (%p425) target = $region36
        $region35: #{tpu_custom_call.1} parent=11 // pred_region
          _
        $region36: #{tpu_custom_call.1} parent=11 // pred_fallthru
          _
        // Predicated region
        $region37: #{tpu_custom_call.1} parent=11 // pred_check
          %p428 = pneg %p202
        $region38: #{tpu_custom_call.1} parent=11 // pred_check_branch
          %430 = sbr.rel (%p428) target = $region40
        $region39: #{tpu_custom_call.1} parent=11 // pred_region
          _
        $region40: #{tpu_custom_call.1} parent=11 // pred_fallthru
          _
        // Predicated region
        $region41: #{tpu_custom_call.1} parent=11 // pred_check
          %p431 = pneg %p223
        $region42: #{tpu_custom_call.1} parent=11 // pred_check_branch
          %433 = sbr.rel (%p431) target = $region44
        $region43: #{tpu_custom_call.1} parent=11 // pred_region
          _
        $region44: #{tpu_custom_call.1} parent=11 // pred_fallthru
          _
        // Predicated region
        $region45: #{tpu_custom_call.1} parent=11 // pred_check
          %p434 = pneg %p244
        $region46: #{tpu_custom_call.1} parent=11 // pred_check_branch
          %436 = sbr.rel (%p434) target = $region48
        $region47: #{tpu_custom_call.1} parent=11 // pred_region
          _
        $region48: #{tpu_custom_call.1} parent=11 // pred_fallthru
          _
        // Predicated region
        $region49: #{tpu_custom_call.1} parent=11 // pred_check
          %p437 = pneg %p265
        $region50: #{tpu_custom_call.1} parent=11 // pred_check_branch
          %439 = sbr.rel (%p437) target = $region52
        $region51: #{tpu_custom_call.1} parent=11 // pred_region
          _
        $region52: #{tpu_custom_call.1} parent=11 // pred_fallthru
          _
        // Predicated region
        $region53: #{tpu_custom_call.1} parent=11 // pred_check
          %p440 = pneg %p286
        $region54: #{tpu_custom_call.1} parent=11 // pred_check_branch
          %442 = sbr.rel (%p440) target = $region56
        $region55: #{tpu_custom_call.1} parent=11 // pred_region
          %s444 = ssub.s32 2048, 2048
          %445 = vsyncadd [#allocation9], %s444
          %s446 = sshll.u32 [#allocation8], 4
          %s447 = int_to_ptr.vmem [resolvable:$true] %s446
          %452 = dma.hbm_to_vmem [thread:$0]  %s11, 2048, %s447, [#allocation9], 128, 128, 8
        $region56: #{tpu_custom_call.1} parent=11 // pred_fallthru
          _
        // Predicated region
        $region57: #{tpu_custom_call.1} parent=11 // pred_check
          %p453 = pneg %p307
        $region58: #{tpu_custom_call.1} parent=11 // pred_check_branch
          %455 = sbr.rel (%p453) target = $region60
        $region59: #{tpu_custom_call.1} parent=11 // pred_region
          _
        $region60: #{tpu_custom_call.1} parent=11 // pred_fallthru
          _
        // Predicated region
        $region61: #{tpu_custom_call.1} parent=11 // pred_check
          %p456 = pneg %p328
        $region62: #{tpu_custom_call.1} parent=11 // pred_check_branch
          %458 = sbr.rel (%p456) target = $region64
        $region63: #{tpu_custom_call.1} parent=11 // pred_region
          %s460 = ssub.s32 2048, 2048
          %461 = vsyncadd [#allocation9], %s460
          %s462 = sshll.u32 [#allocation10], 4
          %s463 = int_to_ptr.vmem [resolvable:$true] %s462
          %468 = dma.hbm_to_vmem [thread:$0]  %s13, 2048, %s463, [#allocation9], 64, 64, 4
        $region64: #{tpu_custom_call.1} parent=11 // pred_fallthru
          _
        // Predicated region
        $region65: #{tpu_custom_call.1} parent=11 // pred_check
          %p469 = pneg %p349
        $region66: #{tpu_custom_call.1} parent=11 // pred_check_branch
          %471 = sbr.rel (%p469) target = $region68
        $region67: #{tpu_custom_call.1} parent=11 // pred_region
          _
        $region68: #{tpu_custom_call.1} parent=11 // pred_fallthru
          _
      $region12: #{tpu_custom_call.1} parent=5 // pred_fallthru
        _
      %p472 = scmp.lt.s32.totalorder %s29, 4
      // Predicated region
      $region69: #{tpu_custom_call.1} parent=5 // pred_check
        %p473 = pneg %p472
      $region70: #{tpu_custom_call.1} parent=5 // pred_check_branch
        %475 = sbr.rel (%p473) target = $region72
      $region71: #{tpu_custom_call.1} parent=5 // pred_region
        // Predicated region
        $region73: #{tpu_custom_call.1} parent=71 // pred_check
          %p476 = pneg %p49
        $region74: #{tpu_custom_call.1} parent=71 // pred_check_branch
          %478 = sbr.rel (%p476) target = $region76
        $region75: #{tpu_custom_call.1} parent=71 // pred_region
          %s479 = sand.u32 %s39, 1
          %s480 = scalar_lea.sflag [#allocation3], %s479
          %s481 = sand.u32 %s39, 1
          %s482 = smul.addr %s481, 256
          %s483 = scalar_lea.vmem [#allocation2], %s482
          %s484 = smul.u32 32, %s29
          %s486 = ssub.s32 4096, 4096
          %487 = vsyncadd %s480, %s486
          %s488 = smul.addr %s484, 128
          %s489 = scalar_lea.hbm %s0, %s488
          %s490 = sshll.u32 %s483, 4
          %s491 = int_to_ptr.vmem [resolvable:$true] %s490
          %496 = dma.hbm_to_vmem [thread:$0]  %s489, 4096, %s491, %s480, 128, 128, 8
        $region76: #{tpu_custom_call.1} parent=71 // pred_fallthru
          _
      $region72: #{tpu_custom_call.1} parent=5 // pred_fallthru
        _
      %p497 = scmp.le.s32.totalorder 1, %s29
      %p498 = scmp.lt.s32.totalorder %s29, 5
      %p499 = pnand %p497, %p498
      %p500 = pneg %p499
      // Predicated region
      $region77: #{tpu_custom_call.1} parent=5 // pred_check
        _
      $region78: #{tpu_custom_call.1} parent=5 // pred_check_branch
        %502 = sbr.rel (%p499) target = $region80
      $region79: #{tpu_custom_call.1} parent=5 // pred_region
        %s503 = ssub.s32 %s29, 1
        %s504 = sand.u32 %s42, 1
        %s505 = scalar_lea.sflag [#allocation3], %s504
        %s506 = sand.u32 %s42, 1
        %s507 = smul.addr %s506, 256
        %s508 = scalar_lea.vmem [#allocation2], %s507
        // Predicated region
        $region81: #{tpu_custom_call.1} parent=79 // pred_check
          %p509 = pneg %p55
        $region82: #{tpu_custom_call.1} parent=79 // pred_check_branch
          %511 = sbr.rel (%p509) target = $region84
        $region83: #{tpu_custom_call.1} parent=79 // pred_region
          %512 = dma.done %s505, 4096
        $region84: #{tpu_custom_call.1} parent=79 // pred_fallthru
          _
        // Predicated region
        $region85: #{tpu_custom_call.1} parent=79 // pred_check
          %p513 = pneg %p76
        $region86: #{tpu_custom_call.1} parent=79 // pred_check_branch
          %515 = sbr.rel (%p513) target = $region88
        $region87: #{tpu_custom_call.1} parent=79 // pred_region
          %516 = dma.done [#allocation6], 2048
        $region88: #{tpu_custom_call.1} parent=79 // pred_fallthru
          _
        // Predicated region
        $region89: #{tpu_custom_call.1} parent=79 // pred_check
          %p517 = pneg %p118
        $region90: #{tpu_custom_call.1} parent=79 // pred_check_branch
          %519 = sbr.rel (%p517) target = $region92
        $region91: #{tpu_custom_call.1} parent=79 // pred_region
          %520 = dma.done [#allocation6], 2048
        $region92: #{tpu_custom_call.1} parent=79 // pred_fallthru
          _
        // Predicated region
        $region93: #{tpu_custom_call.1} parent=79 // pred_check
          %p521 = pneg %p286
        $region94: #{tpu_custom_call.1} parent=79 // pred_check_branch
          %523 = sbr.rel (%p521) target = $region96
        $region95: #{tpu_custom_call.1} parent=79 // pred_region
          %524 = dma.done [#allocation9], 2048
        $region96: #{tpu_custom_call.1} parent=79 // pred_fallthru
          _
        // Predicated region
        $region97: #{tpu_custom_call.1} parent=79 // pred_check
          %p525 = pneg %p328
        $region98: #{tpu_custom_call.1} parent=79 // pred_check_branch
          %527 = sbr.rel (%p525) target = $region100
        $region99: #{tpu_custom_call.1} parent=79 // pred_region
          %528 = dma.done [#allocation9], 2048
        $region100: #{tpu_custom_call.1} parent=79 // pred_fallthru
          _
        %s529 = sand.u32 %s42, 1
        %s530 = scalar_lea.sflag [#allocation3], %s529
        %s531 = sand.u32 %s42, 1
        %s532 = smul.addr %s531, 256
        %s533 = scalar_lea.vmem [#allocation2], %s532
        %p534 = pneg %p55
        %p535 = pneg %p52
        %p536 = pneg %p76
        %p537 = pneg %p73
        %p538 = pneg %p97
        %p539 = pneg %p94
        %p540 = pneg %p118
        %p541 = pneg %p115
        %p542 = pneg %p139
        %p543 = pneg %p136
        %p544 = pneg %p160
        %p545 = pneg %p157
        %p546 = pneg %p181
        %p547 = pneg %p178
        %p548 = pneg %p202
        %p549 = pneg %p199
        %p550 = pneg %p223
        %p551 = pneg %p220
        %p552 = pneg %p244
        %p553 = pneg %p241
        %p554 = pneg %p265
        %p555 = pneg %p262
        %p556 = pneg %p286
        %p557 = pneg %p283
        %p558 = pneg %p307
        %p559 = pneg %p304
        %p560 = pneg %p328
        %p561 = pneg %p325
        %p562 = pneg %p349
        %p563 = pneg %p346
        %p564 = pneg %p375
        %p565 = pneg %p372
        %s566 = sand.u32 %s362, 1
        %s567 = scalar_lea.sflag [#allocation4], %s566
        %s568 = sand.u32 %s362, 1
        %s569 = smul.addr %s568, 256
        %s570 = scalar_lea.vmem [#allocation11], %s569
        %s571 = smul.u32 32, %s34
        %s572 = smul.u32 32, %s34
        %v574 = vld [vmem:[%s508] sm:$0xff]
        %v575 = vld [vmem:[%s508 + $0x8] sm:$0xff]
        %v576 = vld [vmem:[%s508 + $0x10] sm:$0xff]
        %v577 = vld [vmem:[%s508 + $0x18] sm:$0xff]
        %v578 = vld [vmem:[%s508 + $0x20] sm:$0xff]
        %v579 = vld [vmem:[%s508 + $0x28] sm:$0xff]
        %v580 = vld [vmem:[%s508 + $0x30] sm:$0xff]
        %v581 = vld [vmem:[%s508 + $0x38] sm:$0xff]
        %v582 = vld [vmem:[%s508 + $0x40] sm:$0xff]
        %v583 = vld [vmem:[%s508 + $0x48] sm:$0xff]
        %v584 = vld [vmem:[%s508 + $0x50] sm:$0xff]
        %v585 = vld [vmem:[%s508 + $0x58] sm:$0xff]
        %v586 = vld [vmem:[%s508 + $0x60] sm:$0xff]
        %v587 = vld [vmem:[%s508 + $0x68] sm:$0xff]
        %v588 = vld [vmem:[%s508 + $0x70] sm:$0xff]
        %v589 = vld [vmem:[%s508 + $0x78] sm:$0xff]
        %v590 = vld [vmem:[%s508 + $0x80] sm:$0xff]
        %v591 = vld [vmem:[%s508 + $0x88] sm:$0xff]
        %v592 = vld [vmem:[%s508 + $0x90] sm:$0xff]
        %v593 = vld [vmem:[%s508 + $0x98] sm:$0xff]
        %v594 = vld [vmem:[%s508 + $0xa0] sm:$0xff]
        %v595 = vld [vmem:[%s508 + $0xa8] sm:$0xff]
        %v596 = vld [vmem:[%s508 + $0xb0] sm:$0xff]
        %v597 = vld [vmem:[%s508 + $0xb8] sm:$0xff]
        %v598 = vld [vmem:[%s508 + $0xc0] sm:$0xff]
        %v599 = vld [vmem:[%s508 + $0xc8] sm:$0xff]
        %v600 = vld [vmem:[%s508 + $0xd0] sm:$0xff]
        %v601 = vld [vmem:[%s508 + $0xd8] sm:$0xff]
        %v602 = vld [vmem:[%s508 + $0xe0] sm:$0xff]
        %v603 = vld [vmem:[%s508 + $0xe8] sm:$0xff]
        %v604 = vld [vmem:[%s508 + $0xf0] sm:$0xff]
        %v605 = vld [vmem:[%s508 + $0xf8] sm:$0xff]
        %v606 = vld [vmem:[#allocation5] sm:$0xff]
        %v607 = vld [vmem:[#allocation5 + $0x8] sm:$0xff]
        %v608 = vld [vmem:[#allocation5 + $0x10] sm:$0xff]
        %v609 = vld [vmem:[#allocation5 + $0x18] sm:$0xff]
        %v610 = vld [vmem:[#allocation5 + $0x20] sm:$0xff]
        %v611 = vld [vmem:[#allocation5 + $0x28] sm:$0xff]
        %v612 = vld [vmem:[#allocation5 + $0x30] sm:$0xff]
        %v613 = vld [vmem:[#allocation5 + $0x38] sm:$0xff]
        %v614 = vld [vmem:[#allocation5 + $0x40] sm:$0xff]
        %v615 = vld [vmem:[#allocation5 + $0x48] sm:$0xff]
        %v616 = vld [vmem:[#allocation5 + $0x50] sm:$0xff]
        %v617 = vld [vmem:[#allocation5 + $0x58] sm:$0xff]
        %v618 = vld [vmem:[#allocation5 + $0x60] sm:$0xff]
        %v619 = vld [vmem:[#allocation5 + $0x68] sm:$0xff]
        %v620 = vld [vmem:[#allocation5 + $0x70] sm:$0xff]
        %v621 = vld [vmem:[#allocation5 + $0x78] sm:$0xff]
        %v622 = vld [vmem:[%s2] sm:$0x3]
        %v623 = vpack.c.bf16 %v575, %v574
        %v624 = vpack.c.bf16 %v577, %v576
        %v625 = vpack.c.bf16 %v579, %v578
        %v626 = vpack.c.bf16 %v581, %v580
        %v627 = vpack.c.bf16 %v583, %v582
        %v628 = vpack.c.bf16 %v585, %v584
        %v629 = vpack.c.bf16 %v587, %v586
        %v630 = vpack.c.bf16 %v589, %v588
        %v631 = vpack.c.bf16 %v591, %v590
        %v632 = vpack.c.bf16 %v593, %v592
        %v633 = vpack.c.bf16 %v595, %v594
        %v634 = vpack.c.bf16 %v597, %v596
        %v635 = vpack.c.bf16 %v599, %v598
        %v636 = vpack.c.bf16 %v601, %v600
        %v637 = vpack.c.bf16 %v603, %v602
        %v638 = vpack.c.bf16 %v605, %v604
        %v640 = vlaneseq
        %v641 = vshrl.u32 %v640, 7
        %v642 = vsub.s32 0, %v641
        %v643 = vrot.slane %v622, %v642
        %v644 = vlaneseq
        %v645 = vshrl.u32 %v644, 7
        %v646 = vsub.s32 1, %v645
        %v647 = vrot.slane %v622, %v646
        %v666 = vunpack.c.l.b16 %v606
        %v667 = vunpack.c.h.b16 %v606
        %v668 = vunpack.c.l.b16 %v607
        %v669 = vunpack.c.h.b16 %v607
        %v670 = vunpack.c.l.b16 %v608
        %v671 = vunpack.c.h.b16 %v608
        %v672 = vunpack.c.l.b16 %v609
        %v673 = vunpack.c.h.b16 %v609
        %v674 = vunpack.c.l.b16 %v610
        %v675 = vunpack.c.h.b16 %v610
        %v676 = vunpack.c.l.b16 %v611
        %v677 = vunpack.c.h.b16 %v611
        %v678 = vunpack.c.l.b16 %v612
        %v679 = vunpack.c.h.b16 %v612
        %v680 = vunpack.c.l.b16 %v613
        %v681 = vunpack.c.h.b16 %v613
        %v682 = vunpack.c.l.b16 %v614
        %v683 = vunpack.c.h.b16 %v614
        %v684 = vunpack.c.l.b16 %v615
        %v685 = vunpack.c.h.b16 %v615
        %v686 = vunpack.c.l.b16 %v616
        %v687 = vunpack.c.h.b16 %v616
        %v688 = vunpack.c.l.b16 %v617
        %v689 = vunpack.c.h.b16 %v617
        %v690 = vunpack.c.l.b16 %v618
        %v691 = vunpack.c.h.b16 %v618
        %v692 = vunpack.c.l.b16 %v619
        %v693 = vunpack.c.h.b16 %v619
        %v694 = vunpack.c.l.b16 %v620
        %v695 = vunpack.c.h.b16 %v620
        %v696 = vunpack.c.l.b16 %v621
        %v697 = vunpack.c.h.b16 %v621
        %v698 = vpack.c.b16 %v668, %v666
        %v699 = vpack.c.b16 %v669, %v667
        %v700 = vpack.c.b16 %v672, %v670
        %v701 = vpack.c.b16 %v673, %v671
        %v702 = vpack.c.b16 %v676, %v674
        %v703 = vpack.c.b16 %v677, %v675
        %v704 = vpack.c.b16 %v680, %v678
        %v705 = vpack.c.b16 %v681, %v679
        %v706 = vpack.c.b16 %v684, %v682
        %v707 = vpack.c.b16 %v685, %v683
        %v708 = vpack.c.b16 %v688, %v686
        %v709 = vpack.c.b16 %v689, %v687
        %v710 = vpack.c.b16 %v692, %v690
        %v711 = vpack.c.b16 %v693, %v691
        %v712 = vpack.c.b16 %v696, %v694
        %v713 = vpack.c.b16 %v697, %v695
        %730 = vmatprep.subr.bf16.mxu0 %v713
        %731 = vmatpush1.bf16.msra.mxu0 %v712
        %732 = vmatprep.subr.bf16.mxu0 %v711
        %733 = vmatpush1.bf16.msra.mxu0 %v710
        %734 = vmatprep.subr.bf16.mxu0 %v709
        %735 = vmatpush1.bf16.msra.mxu0 %v708
        %736 = vmatprep.subr.bf16.mxu0 %v707
        %737 = vmatpush1.bf16.msra.mxu0 %v706
        %738 = vmatprep.subr.bf16.mxu0 %v705
        %739 = vmatpush1.bf16.msra.mxu0 %v704
        %740 = vmatprep.subr.bf16.mxu0 %v703
        %741 = vmatpush1.bf16.msra.mxu0 %v702
        %742 = vmatprep.subr.bf16.mxu0 %v701
        %743 = vmatpush1.bf16.msra.mxu0 %v700
        %744 = vmatprep.subr.bf16.mxu0 %v699
        %745 = vmatpush1.bf16.msra.mxu0 %v698
        %746 = vmatprep.subr.bf16.mxu0 0
        %747 = vmatpush2.bf16.msra.mxu0 0
        %748 = vmatprep.subr.bf16.mxu0 0
        %749 = vmatpush2.bf16.msra.mxu0 0
        %750 = vmatprep.subr.bf16.mxu0 0
        %751 = vmatpush2.bf16.msra.mxu0 0
        %752 = vmatprep.subr.bf16.mxu0 0
        %753 = vmatpush2.bf16.msra.mxu0 0
        %754 = vmatprep.subr.bf16.mxu0 0
        %755 = vmatpush2.bf16.msra.mxu0 0
        %756 = vmatprep.subr.bf16.mxu0 0
        %757 = vmatpush2.bf16.msra.mxu0 0
        %758 = vmatprep.subr.bf16.mxu0 0
        %759 = vmatpush2.bf16.msra.mxu0 0
        %760 = vmatprep.subr.bf16.mxu0 0
        %761 = vmatpush2.bf16.msra.mxu0 0
        %762 = vmatprep.mubr.bf16.mxu0 0
        %763 = vmatmul.mubr.bf16.gmra.mxu0 %v623
        %v764 = vpop.f32.mrf.mxu0
        %v765 = vadd.f32 %v643, %v764
        %v766 = vpop.f32.mrf.mxu0
        %v767 = vadd.f32 %v647, %v766
        %v768 = vpop.f32.mrf.mxu0
        %v769 = vadd.f32 %v643, %v768
        %v770 = vpop.f32.mrf.mxu0
        %v771 = vadd.f32 %v647, %v770
        %772 = vmatprep.mubr.bf16.mxu0 0
        %773 = vmatmul.mubr.bf16.gmra.mxu0 %v624
        %v774 = vpop.f32.mrf.mxu0
        %v775 = vadd.f32 %v643, %v774
        %v776 = vpop.f32.mrf.mxu0
        %v777 = vadd.f32 %v647, %v776
        %v778 = vpop.f32.mrf.mxu0
        %v779 = vadd.f32 %v643, %v778
        %v780 = vpop.f32.mrf.mxu0
        %v781 = vadd.f32 %v647, %v780
        %782 = vmatprep.mubr.bf16.mxu0 0
        %783 = vmatmul.mubr.bf16.gmra.mxu0 %v625
        %v784 = vpop.f32.mrf.mxu0
        %v785 = vadd.f32 %v643, %v784
        %v786 = vpop.f32.mrf.mxu0
        %v787 = vadd.f32 %v647, %v786
        %v788 = vpop.f32.mrf.mxu0
        %v789 = vadd.f32 %v643, %v788
        %v790 = vpop.f32.mrf.mxu0
        %v791 = vadd.f32 %v647, %v790
        %792 = vmatprep.mubr.bf16.mxu0 0
        %793 = vmatmul.mubr.bf16.gmra.mxu0 %v626
        %v794 = vpop.f32.mrf.mxu0
        %v795 = vadd.f32 %v643, %v794
        %v796 = vpop.f32.mrf.mxu0
        %v797 = vadd.f32 %v647, %v796
        %v798 = vpop.f32.mrf.mxu0
        %v799 = vadd.f32 %v643, %v798
        %v800 = vpop.f32.mrf.mxu0
        %v801 = vadd.f32 %v647, %v800
        %802 = vmatprep.mubr.bf16.mxu0 0
        %803 = vmatmul.mubr.bf16.gmra.mxu0 %v627
        %v804 = vpop.f32.mrf.mxu0
        %v805 = vadd.f32 %v643, %v804
        %v806 = vpop.f32.mrf.mxu0
        %v807 = vadd.f32 %v647, %v806
        %v808 = vpop.f32.mrf.mxu0
        %v809 = vadd.f32 %v643, %v808
        %v810 = vpop.f32.mrf.mxu0
        %v811 = vadd.f32 %v647, %v810
        %812 = vmatprep.mubr.bf16.mxu0 0
        %813 = vmatmul.mubr.bf16.gmra.mxu0 %v628
        %v814 = vpop.f32.mrf.mxu0
        %v815 = vadd.f32 %v643, %v814
        %v816 = vpop.f32.mrf.mxu0
        %v817 = vadd.f32 %v647, %v816
        %v818 = vpop.f32.mrf.mxu0
        %v819 = vadd.f32 %v643, %v818
        %v820 = vpop.f32.mrf.mxu0
        %v821 = vadd.f32 %v647, %v820
        %822 = vmatprep.mubr.bf16.mxu0 0
        %823 = vmatmul.mubr.bf16.gmra.mxu0 %v629
        %v824 = vpop.f32.mrf.mxu0
        %v825 = vadd.f32 %v643, %v824
        %v826 = vpop.f32.mrf.mxu0
        %v827 = vadd.f32 %v647, %v826
        %v828 = vpop.f32.mrf.mxu0
        %v829 = vadd.f32 %v643, %v828
        %v830 = vpop.f32.mrf.mxu0
        %v831 = vadd.f32 %v647, %v830
        %832 = vmatprep.mubr.bf16.mxu0 0
        %833 = vmatmul.mubr.bf16.gmra.mxu0 %v630
        %v834 = vpop.f32.mrf.mxu0
        %v835 = vadd.f32 %v643, %v834
        %v836 = vpop.f32.mrf.mxu0
        %v837 = vadd.f32 %v647, %v836
        %v838 = vpop.f32.mrf.mxu0
        %v839 = vadd.f32 %v643, %v838
        %v840 = vpop.f32.mrf.mxu0
        %v841 = vadd.f32 %v647, %v840
        %842 = vmatprep.mubr.bf16.mxu0 0
        %843 = vmatmul.mubr.bf16.gmra.mxu0 %v631
        %v844 = vpop.f32.mrf.mxu0
        %v845 = vadd.f32 %v643, %v844
        %v846 = vpop.f32.mrf.mxu0
        %v847 = vadd.f32 %v647, %v846
        %v848 = vpop.f32.mrf.mxu0
        %v849 = vadd.f32 %v643, %v848
        %v850 = vpop.f32.mrf.mxu0
        %v851 = vadd.f32 %v647, %v850
        %852 = vmatprep.mubr.bf16.mxu0 0
        %853 = vmatmul.mubr.bf16.gmra.mxu0 %v632
        %v854 = vpop.f32.mrf.mxu0
        %v855 = vadd.f32 %v643, %v854
        %v856 = vpop.f32.mrf.mxu0
        %v857 = vadd.f32 %v647, %v856
        %v858 = vpop.f32.mrf.mxu0
        %v859 = vadd.f32 %v643, %v858
        %v860 = vpop.f32.mrf.mxu0
        %v861 = vadd.f32 %v647, %v860
        %862 = vmatprep.mubr.bf16.mxu0 0
        %863 = vmatmul.mubr.bf16.gmra.mxu0 %v633
        %v864 = vpop.f32.mrf.mxu0
        %v865 = vadd.f32 %v643, %v864
        %v866 = vpop.f32.mrf.mxu0
        %v867 = vadd.f32 %v647, %v866
        %v868 = vpop.f32.mrf.mxu0
        %v869 = vadd.f32 %v643, %v868
        %v870 = vpop.f32.mrf.mxu0
        %v871 = vadd.f32 %v647, %v870
        %872 = vmatprep.mubr.bf16.mxu0 0
        %873 = vmatmul.mubr.bf16.gmra.mxu0 %v634
        %v874 = vpop.f32.mrf.mxu0
        %v875 = vadd.f32 %v643, %v874
        %v876 = vpop.f32.mrf.mxu0
        %v877 = vadd.f32 %v647, %v876
        %v878 = vpop.f32.mrf.mxu0
        %v879 = vadd.f32 %v643, %v878
        %v880 = vpop.f32.mrf.mxu0
        %v881 = vadd.f32 %v647, %v880
        %882 = vmatprep.mubr.bf16.mxu0 0
        %883 = vmatmul.mubr.bf16.gmra.mxu0 %v635
        %v884 = vpop.f32.mrf.mxu0
        %v885 = vadd.f32 %v643, %v884
        %v886 = vpop.f32.mrf.mxu0
        %v887 = vadd.f32 %v647, %v886
        %v888 = vpop.f32.mrf.mxu0
        %v889 = vadd.f32 %v643, %v888
        %v890 = vpop.f32.mrf.mxu0
        %v891 = vadd.f32 %v647, %v890
        %892 = vmatprep.mubr.bf16.mxu0 0
        %893 = vmatmul.mubr.bf16.gmra.mxu0 %v636
        %v894 = vpop.f32.mrf.mxu0
        %v895 = vadd.f32 %v643, %v894
        %v896 = vpop.f32.mrf.mxu0
        %v897 = vadd.f32 %v647, %v896
        %v898 = vpop.f32.mrf.mxu0
        %v899 = vadd.f32 %v643, %v898
        %v900 = vpop.f32.mrf.mxu0
        %v901 = vadd.f32 %v647, %v900
        %902 = vmatprep.mubr.bf16.mxu0 0
        %903 = vmatmul.mubr.bf16.gmra.mxu0 %v637
        %v904 = vpop.f32.mrf.mxu0
        %v905 = vadd.f32 %v643, %v904
        %v906 = vpop.f32.mrf.mxu0
        %v907 = vadd.f32 %v647, %v906
        %v908 = vpop.f32.mrf.mxu0
        %v909 = vadd.f32 %v643, %v908
        %v910 = vpop.f32.mrf.mxu0
        %v911 = vadd.f32 %v647, %v910
        %912 = vmatprep.mubr.bf16.mxu0 0
        %913 = vmatmul.mubr.bf16.gmra.mxu0 %v638
        %v914 = vpop.f32.mrf.mxu0
        %v915 = vadd.f32 %v643, %v914
        %v916 = vpop.f32.mrf.mxu0
        %v917 = vadd.f32 %v647, %v916
        %v918 = vpop.f32.mrf.mxu0
        %v919 = vadd.f32 %v643, %v918
        %v920 = vpop.f32.mrf.mxu0
        %v921 = vadd.f32 %v647, %v920
        %922 = vdwg.mxu0
        %v923 = vtanh.pop %v765
        %v924 = vtanh.pop %v767
        %v925 = vtanh.pop %v769
        %v926 = vtanh.pop %v771
        %v927 = vtanh.pop %v775
        %v928 = vtanh.pop %v777
        %v929 = vtanh.pop %v779
        %v930 = vtanh.pop %v781
        %v931 = vtanh.pop %v785
        %v932 = vtanh.pop %v787
        %v933 = vtanh.pop %v789
        %v934 = vtanh.pop %v791
        %v935 = vtanh.pop %v795
        %v936 = vtanh.pop %v797
        %v937 = vtanh.pop %v799
        %v938 = vtanh.pop %v801
        %v939 = vtanh.pop %v805
        %v940 = vtanh.pop %v807
        %v941 = vtanh.pop %v809
        %v942 = vtanh.pop %v811
        %v943 = vtanh.pop %v815
        %v944 = vtanh.pop %v817
        %v945 = vtanh.pop %v819
        %v946 = vtanh.pop %v821
        %v947 = vtanh.pop %v825
        %v948 = vtanh.pop %v827
        %v949 = vtanh.pop %v829
        %v950 = vtanh.pop %v831
        %v951 = vtanh.pop %v835
        %v952 = vtanh.pop %v837
        %v953 = vtanh.pop %v839
        %v954 = vtanh.pop %v841
        %v955 = vtanh.pop %v845
        %v956 = vtanh.pop %v847
        %v957 = vtanh.pop %v849
        %v958 = vtanh.pop %v851
        %v959 = vtanh.pop %v855
        %v960 = vtanh.pop %v857
        %v961 = vtanh.pop %v859
        %v962 = vtanh.pop %v861
        %v963 = vtanh.pop %v865
        %v964 = vtanh.pop %v867
        %v965 = vtanh.pop %v869
        %v966 = vtanh.pop %v871
        %v967 = vtanh.pop %v875
        %v968 = vtanh.pop %v877
        %v969 = vtanh.pop %v879
        %v970 = vtanh.pop %v881
        %v971 = vtanh.pop %v885
        %v972 = vtanh.pop %v887
        %v973 = vtanh.pop %v889
        %v974 = vtanh.pop %v891
        %v975 = vtanh.pop %v895
        %v976 = vtanh.pop %v897
        %v977 = vtanh.pop %v899
        %v978 = vtanh.pop %v901
        %v979 = vtanh.pop %v905
        %v980 = vtanh.pop %v907
        %v981 = vtanh.pop %v909
        %v982 = vtanh.pop %v911
        %v983 = vtanh.pop %v915
        %v984 = vtanh.pop %v917
        %v985 = vtanh.pop %v919
        %v986 = vtanh.pop %v921
        %v987 = vld [vmem:[#allocation7] sm:$0xf]
        %v988 = vld [vmem:[#allocation7 + $0x4] sm:$0xf]
        %v989 = vld [vmem:[#allocation7 + $0x8] sm:$0xf]
        %v990 = vld [vmem:[#allocation7 + $0xc] sm:$0xf]
        %v991 = vld [vmem:[#allocation7 + $0x10] sm:$0xf]
        %v992 = vld [vmem:[#allocation7 + $0x14] sm:$0xf]
        %v993 = vld [vmem:[#allocation7 + $0x18] sm:$0xf]
        %v994 = vld [vmem:[#allocation7 + $0x1c] sm:$0xf]
        %v995 = vld [vmem:[#allocation7 + $0x20] sm:$0xf]
        %v996 = vld [vmem:[#allocation7 + $0x24] sm:$0xf]
        %v997 = vld [vmem:[#allocation7 + $0x28] sm:$0xf]
        %v998 = vld [vmem:[#allocation7 + $0x2c] sm:$0xf]
        %v999 = vld [vmem:[#allocation7 + $0x30] sm:$0xf]
        %v1000 = vld [vmem:[#allocation7 + $0x34] sm:$0xf]
        %v1001 = vld [vmem:[#allocation7 + $0x38] sm:$0xf]
        %v1002 = vld [vmem:[#allocation7 + $0x3c] sm:$0xf]
        %v1003 = vld [vmem:[#allocation7 + $0x40] sm:$0xf]
        %v1004 = vld [vmem:[#allocation7 + $0x44] sm:$0xf]
        %v1005 = vld [vmem:[#allocation7 + $0x48] sm:$0xf]
        %v1006 = vld [vmem:[#allocation7 + $0x4c] sm:$0xf]
        %v1007 = vld [vmem:[#allocation7 + $0x50] sm:$0xf]
        %v1008 = vld [vmem:[#allocation7 + $0x54] sm:$0xf]
        %v1009 = vld [vmem:[#allocation7 + $0x58] sm:$0xf]
        %v1010 = vld [vmem:[#allocation7 + $0x5c] sm:$0xf]
        %v1011 = vld [vmem:[#allocation7 + $0x60] sm:$0xf]
        %v1012 = vld [vmem:[#allocation7 + $0x64] sm:$0xf]
        %v1013 = vld [vmem:[#allocation7 + $0x68] sm:$0xf]
        %v1014 = vld [vmem:[#allocation7 + $0x6c] sm:$0xf]
        %v1015 = vld [vmem:[#allocation7 + $0x70] sm:$0xf]
        %v1016 = vld [vmem:[#allocation7 + $0x74] sm:$0xf]
        %v1017 = vld [vmem:[#allocation7 + $0x78] sm:$0xf]
        %v1018 = vld [vmem:[#allocation7 + $0x7c] sm:$0xf]
        %v1019 = vld [vmem:[%s4] sm:$0x1]
        %v1020 = vpack.c.bf16 %v925, %v923
        %v1021 = vpack.c.bf16 %v926, %v924
        %v1022 = vpack.c.bf16 %v929, %v927
        %v1023 = vpack.c.bf16 %v930, %v928
        %v1024 = vpack.c.bf16 %v933, %v931
        %v1025 = vpack.c.bf16 %v934, %v932
        %v1026 = vpack.c.bf16 %v937, %v935
        %v1027 = vpack.c.bf16 %v938, %v936
        %v1028 = vpack.c.bf16 %v941, %v939
        %v1029 = vpack.c.bf16 %v942, %v940
        %v1030 = vpack.c.bf16 %v945, %v943
        %v1031 = vpack.c.bf16 %v946, %v944
        %v1032 = vpack.c.bf16 %v949, %v947
        %v1033 = vpack.c.bf16 %v950, %v948
        %v1034 = vpack.c.bf16 %v953, %v951
        %v1035 = vpack.c.bf16 %v954, %v952
        %v1036 = vpack.c.bf16 %v957, %v955
        %v1037 = vpack.c.bf16 %v958, %v956
        %v1038 = vpack.c.bf16 %v961, %v959
        %v1039 = vpack.c.bf16 %v962, %v960
        %v1040 = vpack.c.bf16 %v965, %v963
        %v1041 = vpack.c.bf16 %v966, %v964
        %v1042 = vpack.c.bf16 %v969, %v967
        %v1043 = vpack.c.bf16 %v970, %v968
        %v1044 = vpack.c.bf16 %v973, %v971
        %v1045 = vpack.c.bf16 %v974, %v972
        %v1046 = vpack.c.bf16 %v977, %v975
        %v1047 = vpack.c.bf16 %v978, %v976
        %v1048 = vpack.c.bf16 %v981, %v979
        %v1049 = vpack.c.bf16 %v982, %v980
        %v1050 = vpack.c.bf16 %v985, %v983
        %v1051 = vpack.c.bf16 %v986, %v984
        %v1053 = vlaneseq
        %v1054 = vshrl.u32 %v1053, 7
        %v1055 = vsub.s32 0, %v1054
        %v1056 = vrot.slane %v1019, %v1055
        %v1090 = vunpack.c.l.b16 %v987
        %v1091 = vunpack.c.l.b16 %v988
        %v1092 = vunpack.c.l.b16 %v989
        %v1093 = vunpack.c.l.b16 %v990
        %v1094 = vunpack.c.l.b16 %v991
        %v1095 = vunpack.c.l.b16 %v992
        %v1096 = vunpack.c.l.b16 %v993
        %v1097 = vunpack.c.l.b16 %v994
        %v1098 = vunpack.c.l.b16 %v995
        %v1099 = vunpack.c.l.b16 %v996
        %v1100 = vunpack.c.l.b16 %v997
        %v1101 = vunpack.c.l.b16 %v998
        %v1102 = vunpack.c.l.b16 %v999
        %v1103 = vunpack.c.l.b16 %v1000
        %v1104 = vunpack.c.l.b16 %v1001
        %v1105 = vunpack.c.l.b16 %v1002
        %v1106 = vunpack.c.l.b16 %v1003
        %v1107 = vunpack.c.l.b16 %v1004
        %v1108 = vunpack.c.l.b16 %v1005
        %v1109 = vunpack.c.l.b16 %v1006
        %v1110 = vunpack.c.l.b16 %v1007
        %v1111 = vunpack.c.l.b16 %v1008
        %v1112 = vunpack.c.l.b16 %v1009
        %v1113 = vunpack.c.l.b16 %v1010
        %v1114 = vunpack.c.l.b16 %v1011
        %v1115 = vunpack.c.l.b16 %v1012
        %v1116 = vunpack.c.l.b16 %v1013
        %v1117 = vunpack.c.l.b16 %v1014
        %v1118 = vunpack.c.l.b16 %v1015
        %v1119 = vunpack.c.l.b16 %v1016
        %v1120 = vunpack.c.l.b16 %v1017
        %v1121 = vunpack.c.l.b16 %v1018
        %v1122 = vpack.c.b16 %v1091, %v1090
        %v1123 = vpack.c.b16 %v1093, %v1092
        %v1124 = vpack.c.b16 %v1095, %v1094
        %v1125 = vpack.c.b16 %v1097, %v1096
        %v1126 = vpack.c.b16 %v1099, %v1098
        %v1127 = vpack.c.b16 %v1101, %v1100
        %v1128 = vpack.c.b16 %v1103, %v1102
        %v1129 = vpack.c.b16 %v1105, %v1104
        %v1130 = vpack.c.b16 %v1107, %v1106
        %v1131 = vpack.c.b16 %v1109, %v1108
        %v1132 = vpack.c.b16 %v1111, %v1110
        %v1133 = vpack.c.b16 %v1113, %v1112
        %v1134 = vpack.c.b16 %v1115, %v1114
        %v1135 = vpack.c.b16 %v1117, %v1116
        %v1136 = vpack.c.b16 %v1119, %v1118
        %v1137 = vpack.c.b16 %v1121, %v1120
        %1154 = vmatprep.subr.bf16.mxu0 0
        %1155 = vmatpush1.bf16.msra.mxu0 %v1129
        %1156 = vmatprep.subr.bf16.mxu0 0
        %1157 = vmatpush1.bf16.msra.mxu0 %v1128
        %1158 = vmatprep.subr.bf16.mxu0 0
        %1159 = vmatpush1.bf16.msra.mxu0 %v1127
        %1160 = vmatprep.subr.bf16.mxu0 0
        %1161 = vmatpush1.bf16.msra.mxu0 %v1126
        %1162 = vmatprep.subr.bf16.mxu0 0
        %1163 = vmatpush1.bf16.msra.mxu0 %v1125
        %1164 = vmatprep.subr.bf16.mxu0 0
        %1165 = vmatpush1.bf16.msra.mxu0 %v1124
        %1166 = vmatprep.subr.bf16.mxu0 0
        %1167 = vmatpush1.bf16.msra.mxu0 %v1123
        %1168 = vmatprep.subr.bf16.mxu0 0
        %1169 = vmatpush1.bf16.msra.mxu0 %v1122
        %1170 = vmatprep.subr.bf16.mxu0 0
        %1171 = vmatpush2.bf16.msra.mxu0 %v1137
        %1172 = vmatprep.subr.bf16.mxu0 0
        %1173 = vmatpush2.bf16.msra.mxu0 %v1136
        %1174 = vmatprep.subr.bf16.mxu0 0
        %1175 = vmatpush2.bf16.msra.mxu0 %v1135
        %1176 = vmatprep.subr.bf16.mxu0 0
        %1177 = vmatpush2.bf16.msra.mxu0 %v1134
        %1178 = vmatprep.subr.bf16.mxu0 0
        %1179 = vmatpush2.bf16.msra.mxu0 %v1133
        %1180 = vmatprep.subr.bf16.mxu0 0
        %1181 = vmatpush2.bf16.msra.mxu0 %v1132
        %1182 = vmatprep.subr.bf16.mxu0 0
        %1183 = vmatpush2.bf16.msra.mxu0 %v1131
        %1184 = vmatprep.subr.bf16.mxu0 0
        %1185 = vmatpush2.bf16.msra.mxu0 %v1130
        %1186 = vmatprep.mubr.bf16.mxu0 %v1021
        %1187 = vmatmul.mubr.bf16.gmra.mxu0 %v1020
        %v1188 = vpop.f32.mrf.mxu0
        %v1189 = vadd.f32 %v1056, %v1188
        %v1190 = vpop.f32.mrf.mxu0
        %v1191 = vpop.f32.mrf.mxu0
        %v1192 = vadd.f32 %v1056, %v1191
        %v1193 = vpop.f32.mrf.mxu0
        %1194 = vmatprep.mubr.bf16.mxu0 %v1023
        %1195 = vmatmul.mubr.bf16.gmra.mxu0 %v1022
        %v1196 = vpop.f32.mrf.mxu0
        %v1197 = vadd.f32 %v1056, %v1196
        %v1198 = vpop.f32.mrf.mxu0
        %v1199 = vpop.f32.mrf.mxu0
        %v1200 = vadd.f32 %v1056, %v1199
        %v1201 = vpop.f32.mrf.mxu0
        %1202 = vmatprep.mubr.bf16.mxu0 %v1025
        %1203 = vmatmul.mubr.bf16.gmra.mxu0 %v1024
        %v1204 = vpop.f32.mrf.mxu0
        %v1205 = vadd.f32 %v1056, %v1204
        %v1206 = vpop.f32.mrf.mxu0
        %v1207 = vpop.f32.mrf.mxu0
        %v1208 = vadd.f32 %v1056, %v1207
        %v1209 = vpop.f32.mrf.mxu0
        %1210 = vmatprep.mubr.bf16.mxu0 %v1027
        %1211 = vmatmul.mubr.bf16.gmra.mxu0 %v1026
        %v1212 = vpop.f32.mrf.mxu0
        %v1213 = vadd.f32 %v1056, %v1212
        %v1214 = vpop.f32.mrf.mxu0
        %v1215 = vpop.f32.mrf.mxu0
        %v1216 = vadd.f32 %v1056, %v1215
        %v1217 = vpop.f32.mrf.mxu0
        %1218 = vmatprep.mubr.bf16.mxu0 %v1029
        %1219 = vmatmul.mubr.bf16.gmra.mxu0 %v1028
        %v1220 = vpop.f32.mrf.mxu0
        %v1221 = vadd.f32 %v1056, %v1220
        %v1222 = vpop.f32.mrf.mxu0
        %v1223 = vpop.f32.mrf.mxu0
        %v1224 = vadd.f32 %v1056, %v1223
        %v1225 = vpop.f32.mrf.mxu0
        %1226 = vmatprep.mubr.bf16.mxu0 %v1031
        %1227 = vmatmul.mubr.bf16.gmra.mxu0 %v1030
        %v1228 = vpop.f32.mrf.mxu0
        %v1229 = vadd.f32 %v1056, %v1228
        %v1230 = vpop.f32.mrf.mxu0
        %v1231 = vpop.f32.mrf.mxu0
        %v1232 = vadd.f32 %v1056, %v1231
        %v1233 = vpop.f32.mrf.mxu0
        %1234 = vmatprep.mubr.bf16.mxu0 %v1033
        %1235 = vmatmul.mubr.bf16.gmra.mxu0 %v1032
        %v1236 = vpop.f32.mrf.mxu0
        %v1237 = vadd.f32 %v1056, %v1236
        %v1238 = vpop.f32.mrf.mxu0
        %v1239 = vpop.f32.mrf.mxu0
        %v1240 = vadd.f32 %v1056, %v1239
        %v1241 = vpop.f32.mrf.mxu0
        %1242 = vmatprep.mubr.bf16.mxu0 %v1035
        %1243 = vmatmul.mubr.bf16.gmra.mxu0 %v1034
        %v1244 = vpop.f32.mrf.mxu0
        %v1245 = vadd.f32 %v1056, %v1244
        %v1246 = vpop.f32.mrf.mxu0
        %v1247 = vpop.f32.mrf.mxu0
        %v1248 = vadd.f32 %v1056, %v1247
        %v1249 = vpop.f32.mrf.mxu0
        %1250 = vmatprep.mubr.bf16.mxu0 %v1037
        %1251 = vmatmul.mubr.bf16.gmra.mxu0 %v1036
        %v1252 = vpop.f32.mrf.mxu0
        %v1253 = vadd.f32 %v1056, %v1252
        %v1254 = vpop.f32.mrf.mxu0
        %v1255 = vpop.f32.mrf.mxu0
        %v1256 = vadd.f32 %v1056, %v1255
        %v1257 = vpop.f32.mrf.mxu0
        %1258 = vmatprep.mubr.bf16.mxu0 %v1039
        %1259 = vmatmul.mubr.bf16.gmra.mxu0 %v1038
        %v1260 = vpop.f32.mrf.mxu0
        %v1261 = vadd.f32 %v1056, %v1260
        %v1262 = vpop.f32.mrf.mxu0
        %v1263 = vpop.f32.mrf.mxu0
        %v1264 = vadd.f32 %v1056, %v1263
        %v1265 = vpop.f32.mrf.mxu0
        %1266 = vmatprep.mubr.bf16.mxu0 %v1041
        %1267 = vmatmul.mubr.bf16.gmra.mxu0 %v1040
        %v1268 = vpop.f32.mrf.mxu0
        %v1269 = vadd.f32 %v1056, %v1268
        %v1270 = vpop.f32.mrf.mxu0
        %v1271 = vpop.f32.mrf.mxu0
        %v1272 = vadd.f32 %v1056, %v1271
        %v1273 = vpop.f32.mrf.mxu0
        %1274 = vmatprep.mubr.bf16.mxu0 %v1043
        %1275 = vmatmul.mubr.bf16.gmra.mxu0 %v1042
        %v1276 = vpop.f32.mrf.mxu0
        %v1277 = vadd.f32 %v1056, %v1276
        %v1278 = vpop.f32.mrf.mxu0
        %v1279 = vpop.f32.mrf.mxu0
        %v1280 = vadd.f32 %v1056, %v1279
        %v1281 = vpop.f32.mrf.mxu0
        %1282 = vmatprep.mubr.bf16.mxu0 %v1045
        %1283 = vmatmul.mubr.bf16.gmra.mxu0 %v1044
        %v1284 = vpop.f32.mrf.mxu0
        %v1285 = vadd.f32 %v1056, %v1284
        %v1286 = vpop.f32.mrf.mxu0
        %v1287 = vpop.f32.mrf.mxu0
        %v1288 = vadd.f32 %v1056, %v1287
        %v1289 = vpop.f32.mrf.mxu0
        %1290 = vmatprep.mubr.bf16.mxu0 %v1047
        %1291 = vmatmul.mubr.bf16.gmra.mxu0 %v1046
        %v1292 = vpop.f32.mrf.mxu0
        %v1293 = vadd.f32 %v1056, %v1292
        %v1294 = vpop.f32.mrf.mxu0
        %v1295 = vpop.f32.mrf.mxu0
        %v1296 = vadd.f32 %v1056, %v1295
        %v1297 = vpop.f32.mrf.mxu0
        %1298 = vmatprep.mubr.bf16.mxu0 %v1049
        %1299 = vmatmul.mubr.bf16.gmra.mxu0 %v1048
        %v1300 = vpop.f32.mrf.mxu0
        %v1301 = vadd.f32 %v1056, %v1300
        %v1302 = vpop.f32.mrf.mxu0
        %v1303 = vpop.f32.mrf.mxu0
        %v1304 = vadd.f32 %v1056, %v1303
        %v1305 = vpop.f32.mrf.mxu0
        %1306 = vmatprep.mubr.bf16.mxu0 %v1051
        %1307 = vmatmul.mubr.bf16.gmra.mxu0 %v1050
        %v1308 = vpop.f32.mrf.mxu0
        %v1309 = vadd.f32 %v1056, %v1308
        %v1310 = vpop.f32.mrf.mxu0
        %v1311 = vpop.f32.mrf.mxu0
        %v1312 = vadd.f32 %v1056, %v1311
        %v1313 = vpop.f32.mrf.mxu0
        %1314 = vdwg.mxu0
        %v1315 = vtanh.pop %v1189
        %v1316 = vtanh.pop %v1192
        %v1317 = vtanh.pop %v1197
        %v1318 = vtanh.pop %v1200
        %v1319 = vtanh.pop %v1205
        %v1320 = vtanh.pop %v1208
        %v1321 = vtanh.pop %v1213
        %v1322 = vtanh.pop %v1216
        %v1323 = vtanh.pop %v1221
        %v1324 = vtanh.pop %v1224
        %v1325 = vtanh.pop %v1229
        %v1326 = vtanh.pop %v1232
        %v1327 = vtanh.pop %v1237
        %v1328 = vtanh.pop %v1240
        %v1329 = vtanh.pop %v1245
        %v1330 = vtanh.pop %v1248
        %v1331 = vtanh.pop %v1253
        %v1332 = vtanh.pop %v1256
        %v1333 = vtanh.pop %v1261
        %v1334 = vtanh.pop %v1264
        %v1335 = vtanh.pop %v1269
        %v1336 = vtanh.pop %v1272
        %v1337 = vtanh.pop %v1277
        %v1338 = vtanh.pop %v1280
        %v1339 = vtanh.pop %v1285
        %v1340 = vtanh.pop %v1288
        %v1341 = vtanh.pop %v1293
        %v1342 = vtanh.pop %v1296
        %v1343 = vtanh.pop %v1301
        %v1344 = vtanh.pop %v1304
        %v1345 = vtanh.pop %v1309
        %v1346 = vtanh.pop %v1312
        %v1347 = vld [vmem:[%s5] sm:$0xf]
        %v1348 = vld [vmem:[%s5 + $0x4] sm:$0xf]
        %v1349 = vld [vmem:[%s5 + $0x8] sm:$0xf]
        %v1350 = vld [vmem:[%s5 + $0xc] sm:$0xf]
        %v1351 = vld [vmem:[%s5 + $0x10] sm:$0xf]
        %v1352 = vld [vmem:[%s5 + $0x14] sm:$0xf]
        %v1353 = vld [vmem:[%s5 + $0x18] sm:$0xf]
        %v1354 = vld [vmem:[%s5 + $0x1c] sm:$0xf]
        %v1355 = vld [vmem:[%s5 + $0x20] sm:$0xf]
        %v1356 = vld [vmem:[%s5 + $0x24] sm:$0xf]
        %v1357 = vld [vmem:[%s5 + $0x28] sm:$0xf]
        %v1358 = vld [vmem:[%s5 + $0x2c] sm:$0xf]
        %v1359 = vld [vmem:[%s5 + $0x30] sm:$0xf]
        %v1360 = vld [vmem:[%s5 + $0x34] sm:$0xf]
        %v1361 = vld [vmem:[%s5 + $0x38] sm:$0xf]
        %v1362 = vld [vmem:[%s5 + $0x3c] sm:$0xf]
        %v1363 = vld [vmem:[%s6] sm:$0x1]
        %v1364 = vpack.c.bf16 %v1316, %v1315
        %v1365 = vpack.c.bf16 %v1318, %v1317
        %v1366 = vpack.c.bf16 %v1320, %v1319
        %v1367 = vpack.c.bf16 %v1322, %v1321
        %v1368 = vpack.c.bf16 %v1324, %v1323
        %v1369 = vpack.c.bf16 %v1326, %v1325
        %v1370 = vpack.c.bf16 %v1328, %v1327
        %v1371 = vpack.c.bf16 %v1330, %v1329
        %v1372 = vpack.c.bf16 %v1332, %v1331
        %v1373 = vpack.c.bf16 %v1334, %v1333
        %v1374 = vpack.c.bf16 %v1336, %v1335
        %v1375 = vpack.c.bf16 %v1338, %v1337
        %v1376 = vpack.c.bf16 %v1340, %v1339
        %v1377 = vpack.c.bf16 %v1342, %v1341
        %v1378 = vpack.c.bf16 %v1344, %v1343
        %v1379 = vpack.c.bf16 %v1346, %v1345
        %v1381 = vlaneseq
        %v1382 = vshrl.u32 %v1381, 7
        %v1383 = vsub.s32 0, %v1382
        %v1384 = vrot.slane %v1363, %v1383
        %v1402 = vunpack.c.l.b16 %v1347
        %v1403 = vunpack.c.l.b16 %v1348
        %v1404 = vunpack.c.l.b16 %v1349
        %v1405 = vunpack.c.l.b16 %v1350
        %v1406 = vunpack.c.l.b16 %v1351
        %v1407 = vunpack.c.l.b16 %v1352
        %v1408 = vunpack.c.l.b16 %v1353
        %v1409 = vunpack.c.l.b16 %v1354
        %v1410 = vunpack.c.l.b16 %v1355
        %v1411 = vunpack.c.l.b16 %v1356
        %v1412 = vunpack.c.l.b16 %v1357
        %v1413 = vunpack.c.l.b16 %v1358
        %v1414 = vunpack.c.l.b16 %v1359
        %v1415 = vunpack.c.l.b16 %v1360
        %v1416 = vunpack.c.l.b16 %v1361
        %v1417 = vunpack.c.l.b16 %v1362
        %v1418 = vpack.c.b16 %v1403, %v1402
        %v1419 = vpack.c.b16 %v1405, %v1404
        %v1420 = vpack.c.b16 %v1407, %v1406
        %v1421 = vpack.c.b16 %v1409, %v1408
        %v1422 = vpack.c.b16 %v1411, %v1410
        %v1423 = vpack.c.b16 %v1413, %v1412
        %v1424 = vpack.c.b16 %v1415, %v1414
        %v1425 = vpack.c.b16 %v1417, %v1416
        %1434 = vmatprep.subr.bf16.mxu0 0
        %1435 = vmatpush1.bf16.msra.mxu0 %v1425
        %1436 = vmatprep.subr.bf16.mxu0 0
        %1437 = vmatpush1.bf16.msra.mxu0 %v1424
        %1438 = vmatprep.subr.bf16.mxu0 0
        %1439 = vmatpush1.bf16.msra.mxu0 %v1423
        %1440 = vmatprep.subr.bf16.mxu0 0
        %1441 = vmatpush1.bf16.msra.mxu0 %v1422
        %1442 = vmatprep.subr.bf16.mxu0 0
        %1443 = vmatpush1.bf16.msra.mxu0 %v1421
        %1444 = vmatprep.subr.bf16.mxu0 0
        %1445 = vmatpush1.bf16.msra.mxu0 %v1420
        %1446 = vmatprep.subr.bf16.mxu0 0
        %1447 = vmatpush1.bf16.msra.mxu0 %v1419
        %1448 = vmatprep.subr.bf16.mxu0 0
        %1449 = vmatpush1.bf16.msra.mxu0 %v1418
        %1450 = vmatprep.subr.bf16.mxu0 0
        %1451 = vmatpush2.bf16.msra.mxu0 0
        %1452 = vmatprep.subr.bf16.mxu0 0
        %1453 = vmatpush2.bf16.msra.mxu0 0
        %1454 = vmatprep.subr.bf16.mxu0 0
        %1455 = vmatpush2.bf16.msra.mxu0 0
        %1456 = vmatprep.subr.bf16.mxu0 0
        %1457 = vmatpush2.bf16.msra.mxu0 0
        %1458 = vmatprep.subr.bf16.mxu0 0
        %1459 = vmatpush2.bf16.msra.mxu0 0
        %1460 = vmatprep.subr.bf16.mxu0 0
        %1461 = vmatpush2.bf16.msra.mxu0 0
        %1462 = vmatprep.subr.bf16.mxu0 0
        %1463 = vmatpush2.bf16.msra.mxu0 0
        %1464 = vmatprep.subr.bf16.mxu0 0
        %1465 = vmatpush2.bf16.msra.mxu0 0
        %1466 = vmatprep.mubr.bf16.mxu0 0
        %1467 = vmatmul.mubr.bf16.gmra.mxu0 %v1364
        %v1468 = vpop.f32.mrf.mxu0
        %v1469 = vadd.f32 %v1384, %v1468
        %v1470 = vpop.f32.mrf.mxu0
        %v1471 = vpop.f32.mrf.mxu0
        %v1472 = vadd.f32 %v1384, %v1471
        %v1473 = vpop.f32.mrf.mxu0
        %1474 = vmatprep.mubr.bf16.mxu0 0
        %1475 = vmatmul.mubr.bf16.gmra.mxu0 %v1365
        %v1476 = vpop.f32.mrf.mxu0
        %v1477 = vadd.f32 %v1384, %v1476
        %v1478 = vpop.f32.mrf.mxu0
        %v1479 = vpop.f32.mrf.mxu0
        %v1480 = vadd.f32 %v1384, %v1479
        %v1481 = vpop.f32.mrf.mxu0
        %1482 = vmatprep.mubr.bf16.mxu0 0
        %1483 = vmatmul.mubr.bf16.gmra.mxu0 %v1366
        %v1484 = vpop.f32.mrf.mxu0
        %v1485 = vadd.f32 %v1384, %v1484
        %v1486 = vpop.f32.mrf.mxu0
        %v1487 = vpop.f32.mrf.mxu0
        %v1488 = vadd.f32 %v1384, %v1487
        %v1489 = vpop.f32.mrf.mxu0
        %1490 = vmatprep.mubr.bf16.mxu0 0
        %1491 = vmatmul.mubr.bf16.gmra.mxu0 %v1367
        %v1492 = vpop.f32.mrf.mxu0
        %v1493 = vadd.f32 %v1384, %v1492
        %v1494 = vpop.f32.mrf.mxu0
        %v1495 = vpop.f32.mrf.mxu0
        %v1496 = vadd.f32 %v1384, %v1495
        %v1497 = vpop.f32.mrf.mxu0
        %1498 = vmatprep.mubr.bf16.mxu0 0
        %1499 = vmatmul.mubr.bf16.gmra.mxu0 %v1368
        %v1500 = vpop.f32.mrf.mxu0
        %v1501 = vadd.f32 %v1384, %v1500
        %v1502 = vpop.f32.mrf.mxu0
        %v1503 = vpop.f32.mrf.mxu0
        %v1504 = vadd.f32 %v1384, %v1503
        %v1505 = vpop.f32.mrf.mxu0
        %1506 = vmatprep.mubr.bf16.mxu0 0
        %1507 = vmatmul.mubr.bf16.gmra.mxu0 %v1369
        %v1508 = vpop.f32.mrf.mxu0
        %v1509 = vadd.f32 %v1384, %v1508
        %v1510 = vpop.f32.mrf.mxu0
        %v1511 = vpop.f32.mrf.mxu0
        %v1512 = vadd.f32 %v1384, %v1511
        %v1513 = vpop.f32.mrf.mxu0
        %1514 = vmatprep.mubr.bf16.mxu0 0
        %1515 = vmatmul.mubr.bf16.gmra.mxu0 %v1370
        %v1516 = vpop.f32.mrf.mxu0
        %v1517 = vadd.f32 %v1384, %v1516
        %v1518 = vpop.f32.mrf.mxu0
        %v1519 = vpop.f32.mrf.mxu0
        %v1520 = vadd.f32 %v1384, %v1519
        %v1521 = vpop.f32.mrf.mxu0
        %1522 = vmatprep.mubr.bf16.mxu0 0
        %1523 = vmatmul.mubr.bf16.gmra.mxu0 %v1371
        %v1524 = vpop.f32.mrf.mxu0
        %v1525 = vadd.f32 %v1384, %v1524
        %v1526 = vpop.f32.mrf.mxu0
        %v1527 = vpop.f32.mrf.mxu0
        %v1528 = vadd.f32 %v1384, %v1527
        %v1529 = vpop.f32.mrf.mxu0
        %1530 = vmatprep.mubr.bf16.mxu0 0
        %1531 = vmatmul.mubr.bf16.gmra.mxu0 %v1372
        %v1532 = vpop.f32.mrf.mxu0
        %v1533 = vadd.f32 %v1384, %v1532
        %v1534 = vpop.f32.mrf.mxu0
        %v1535 = vpop.f32.mrf.mxu0
        %v1536 = vadd.f32 %v1384, %v1535
        %v1537 = vpop.f32.mrf.mxu0
        %1538 = vmatprep.mubr.bf16.mxu0 0
        %1539 = vmatmul.mubr.bf16.gmra.mxu0 %v1373
        %v1540 = vpop.f32.mrf.mxu0
        %v1541 = vadd.f32 %v1384, %v1540
        %v1542 = vpop.f32.mrf.mxu0
        %v1543 = vpop.f32.mrf.mxu0
        %v1544 = vadd.f32 %v1384, %v1543
        %v1545 = vpop.f32.mrf.mxu0
        %1546 = vmatprep.mubr.bf16.mxu0 0
        %1547 = vmatmul.mubr.bf16.gmra.mxu0 %v1374
        %v1548 = vpop.f32.mrf.mxu0
        %v1549 = vadd.f32 %v1384, %v1548
        %v1550 = vpop.f32.mrf.mxu0
        %v1551 = vpop.f32.mrf.mxu0
        %v1552 = vadd.f32 %v1384, %v1551
        %v1553 = vpop.f32.mrf.mxu0
        %1554 = vmatprep.mubr.bf16.mxu0 0
        %1555 = vmatmul.mubr.bf16.gmra.mxu0 %v1375
        %v1556 = vpop.f32.mrf.mxu0
        %v1557 = vadd.f32 %v1384, %v1556
        %v1558 = vpop.f32.mrf.mxu0
        %v1559 = vpop.f32.mrf.mxu0
        %v1560 = vadd.f32 %v1384, %v1559
        %v1561 = vpop.f32.mrf.mxu0
        %1562 = vmatprep.mubr.bf16.mxu0 0
        %1563 = vmatmul.mubr.bf16.gmra.mxu0 %v1376
        %v1564 = vpop.f32.mrf.mxu0
        %v1565 = vadd.f32 %v1384, %v1564
        %v1566 = vpop.f32.mrf.mxu0
        %v1567 = vpop.f32.mrf.mxu0
        %v1568 = vadd.f32 %v1384, %v1567
        %v1569 = vpop.f32.mrf.mxu0
        %1570 = vmatprep.mubr.bf16.mxu0 0
        %1571 = vmatmul.mubr.bf16.gmra.mxu0 %v1377
        %v1572 = vpop.f32.mrf.mxu0
        %v1573 = vadd.f32 %v1384, %v1572
        %v1574 = vpop.f32.mrf.mxu0
        %v1575 = vpop.f32.mrf.mxu0
        %v1576 = vadd.f32 %v1384, %v1575
        %v1577 = vpop.f32.mrf.mxu0
        %1578 = vmatprep.mubr.bf16.mxu0 0
        %1579 = vmatmul.mubr.bf16.gmra.mxu0 %v1378
        %v1580 = vpop.f32.mrf.mxu0
        %v1581 = vadd.f32 %v1384, %v1580
        %v1582 = vpop.f32.mrf.mxu0
        %v1583 = vpop.f32.mrf.mxu0
        %v1584 = vadd.f32 %v1384, %v1583
        %v1585 = vpop.f32.mrf.mxu0
        %1586 = vmatprep.mubr.bf16.mxu0 0
        %1587 = vmatmul.mubr.bf16.gmra.mxu0 %v1379
        %v1588 = vpop.f32.mrf.mxu0
        %v1589 = vadd.f32 %v1384, %v1588
        %v1590 = vpop.f32.mrf.mxu0
        %v1591 = vpop.f32.mrf.mxu0
        %v1592 = vadd.f32 %v1384, %v1591
        %v1593 = vpop.f32.mrf.mxu0
        %1594 = vdwg.mxu0
        %v1595 = vtanh.pop %v1469
        %v1596 = vtanh.pop %v1472
        %v1597 = vtanh.pop %v1477
        %v1598 = vtanh.pop %v1480
        %v1599 = vtanh.pop %v1485
        %v1600 = vtanh.pop %v1488
        %v1601 = vtanh.pop %v1493
        %v1602 = vtanh.pop %v1496
        %v1603 = vtanh.pop %v1501
        %v1604 = vtanh.pop %v1504
        %v1605 = vtanh.pop %v1509
        %v1606 = vtanh.pop %v1512
        %v1607 = vtanh.pop %v1517
        %v1608 = vtanh.pop %v1520
        %v1609 = vtanh.pop %v1525
        %v1610 = vtanh.pop %v1528
        %v1611 = vtanh.pop %v1533
        %v1612 = vtanh.pop %v1536
        %v1613 = vtanh.pop %v1541
        %v1614 = vtanh.pop %v1544
        %v1615 = vtanh.pop %v1549
        %v1616 = vtanh.pop %v1552
        %v1617 = vtanh.pop %v1557
        %v1618 = vtanh.pop %v1560
        %v1619 = vtanh.pop %v1565
        %v1620 = vtanh.pop %v1568
        %v1621 = vtanh.pop %v1573
        %v1622 = vtanh.pop %v1576
        %v1623 = vtanh.pop %v1581
        %v1624 = vtanh.pop %v1584
        %v1625 = vtanh.pop %v1589
        %v1626 = vtanh.pop %v1592
        %v1627 = vld [vmem:[%s7] sm:$0xf]
        %v1628 = vld [vmem:[%s7 + $0x4] sm:$0xf]
        %v1629 = vld [vmem:[%s7 + $0x8] sm:$0xf]
        %v1630 = vld [vmem:[%s7 + $0xc] sm:$0xf]
        %v1631 = vld [vmem:[%s7 + $0x10] sm:$0xf]
        %v1632 = vld [vmem:[%s7 + $0x14] sm:$0xf]
        %v1633 = vld [vmem:[%s7 + $0x18] sm:$0xf]
        %v1634 = vld [vmem:[%s7 + $0x1c] sm:$0xf]
        %v1635 = vld [vmem:[%s8] sm:$0x1]
        %v1636 = vpack.c.bf16 %v1596, %v1595
        %v1637 = vpack.c.bf16 %v1598, %v1597
        %v1638 = vpack.c.bf16 %v1600, %v1599
        %v1639 = vpack.c.bf16 %v1602, %v1601
        %v1640 = vpack.c.bf16 %v1604, %v1603
        %v1641 = vpack.c.bf16 %v1606, %v1605
        %v1642 = vpack.c.bf16 %v1608, %v1607
        %v1643 = vpack.c.bf16 %v1610, %v1609
        %v1644 = vpack.c.bf16 %v1612, %v1611
        %v1645 = vpack.c.bf16 %v1614, %v1613
        %v1646 = vpack.c.bf16 %v1616, %v1615
        %v1647 = vpack.c.bf16 %v1618, %v1617
        %v1648 = vpack.c.bf16 %v1620, %v1619
        %v1649 = vpack.c.bf16 %v1622, %v1621
        %v1650 = vpack.c.bf16 %v1624, %v1623
        %v1651 = vpack.c.bf16 %v1626, %v1625
        %v1653 = vlaneseq
        %v1654 = vshrl.u32 %v1653, 7
        %v1655 = vsub.s32 0, %v1654
        %v1656 = vrot.slane %v1635, %v1655
        %v1666 = vunpack.c.l.b16 %v1627
        %v1667 = vunpack.c.l.b16 %v1628
        %v1668 = vunpack.c.l.b16 %v1629
        %v1669 = vunpack.c.l.b16 %v1630
        %v1670 = vunpack.c.l.b16 %v1631
        %v1671 = vunpack.c.l.b16 %v1632
        %v1672 = vunpack.c.l.b16 %v1633
        %v1673 = vunpack.c.l.b16 %v1634
        %v1674 = vpack.c.b16 %v1667, %v1666
        %v1675 = vpack.c.b16 %v1669, %v1668
        %v1676 = vpack.c.b16 %v1671, %v1670
        %v1677 = vpack.c.b16 %v1673, %v1672
        %vm1682 = vcmask 523264
        %v1684 = vsel %vm1682, %v1636, 0
        %v1687 = vsel %vm1682, %v1637, 0
        %v1690 = vsel %vm1682, %v1638, 0
        %v1693 = vsel %vm1682, %v1639, 0
        %v1696 = vsel %vm1682, %v1640, 0
        %v1699 = vsel %vm1682, %v1641, 0
        %v1702 = vsel %vm1682, %v1642, 0
        %v1705 = vsel %vm1682, %v1643, 0
        %v1708 = vsel %vm1682, %v1644, 0
        %v1711 = vsel %vm1682, %v1645, 0
        %v1714 = vsel %vm1682, %v1646, 0
        %v1717 = vsel %vm1682, %v1647, 0
        %v1720 = vsel %vm1682, %v1648, 0
        %v1723 = vsel %vm1682, %v1649, 0
        %v1726 = vsel %vm1682, %v1650, 0
        %v1729 = vsel %vm1682, %v1651, 0
        %1731 = vmatprep.subr.bf16.mxu0 0
        %1732 = vmatpush1.bf16.msra.mxu0 0
        %1733 = vmatprep.subr.bf16.mxu0 0
        %1734 = vmatpush1.bf16.msra.mxu0 0
        %1735 = vmatprep.subr.bf16.mxu0 0
        %1736 = vmatpush1.bf16.msra.mxu0 0
        %1737 = vmatprep.subr.bf16.mxu0 0
        %1738 = vmatpush1.bf16.msra.mxu0 0
        %1739 = vmatprep.subr.bf16.mxu0 0
        %1740 = vmatpush1.bf16.msra.mxu0 %v1677
        %1741 = vmatprep.subr.bf16.mxu0 0
        %1742 = vmatpush1.bf16.msra.mxu0 %v1676
        %1743 = vmatprep.subr.bf16.mxu0 0
        %1744 = vmatpush1.bf16.msra.mxu0 %v1675
        %1745 = vmatprep.subr.bf16.mxu0 0
        %1746 = vmatpush1.bf16.msra.mxu0 %v1674
        %1747 = vmatprep.subr.bf16.mxu0 0
        %1748 = vmatpush2.bf16.msra.mxu0 0
        %1749 = vmatprep.subr.bf16.mxu0 0
        %1750 = vmatpush2.bf16.msra.mxu0 0
        %1751 = vmatprep.subr.bf16.mxu0 0
        %1752 = vmatpush2.bf16.msra.mxu0 0
        %1753 = vmatprep.subr.bf16.mxu0 0
        %1754 = vmatpush2.bf16.msra.mxu0 0
        %1755 = vmatprep.subr.bf16.mxu0 0
        %1756 = vmatpush2.bf16.msra.mxu0 0
        %1757 = vmatprep.subr.bf16.mxu0 0
        %1758 = vmatpush2.bf16.msra.mxu0 0
        %1759 = vmatprep.subr.bf16.mxu0 0
        %1760 = vmatpush2.bf16.msra.mxu0 0
        %1761 = vmatprep.subr.bf16.mxu0 0
        %1762 = vmatpush2.bf16.msra.mxu0 0
        %1763 = vmatprep.mubr.bf16.mxu0 0
        %1764 = vmatmul.mubr.bf16.gmra.mxu0 %v1684
        %v1765 = vpop.f32.mrf.mxu0
        %v1766 = vadd.f32 %v1656, %v1765
        %v1767 = vpop.f32.mrf.mxu0
        %v1768 = vpop.f32.mrf.mxu0
        %v1769 = vadd.f32 %v1656, %v1768
        %v1770 = vpop.f32.mrf.mxu0
        %1771 = vmatprep.mubr.bf16.mxu0 0
        %1772 = vmatmul.mubr.bf16.gmra.mxu0 %v1687
        %v1773 = vpop.f32.mrf.mxu0
        %v1774 = vadd.f32 %v1656, %v1773
        %v1775 = vpop.f32.mrf.mxu0
        %v1776 = vpop.f32.mrf.mxu0
        %v1777 = vadd.f32 %v1656, %v1776
        %v1778 = vpop.f32.mrf.mxu0
        %1779 = vmatprep.mubr.bf16.mxu0 0
        %1780 = vmatmul.mubr.bf16.gmra.mxu0 %v1690
        %v1781 = vpop.f32.mrf.mxu0
        %v1782 = vadd.f32 %v1656, %v1781
        %v1783 = vpop.f32.mrf.mxu0
        %v1784 = vpop.f32.mrf.mxu0
        %v1785 = vadd.f32 %v1656, %v1784
        %v1786 = vpop.f32.mrf.mxu0
        %1787 = vmatprep.mubr.bf16.mxu0 0
        %1788 = vmatmul.mubr.bf16.gmra.mxu0 %v1693
        %v1789 = vpop.f32.mrf.mxu0
        %v1790 = vadd.f32 %v1656, %v1789
        %v1791 = vpop.f32.mrf.mxu0
        %v1792 = vpop.f32.mrf.mxu0
        %v1793 = vadd.f32 %v1656, %v1792
        %v1794 = vpop.f32.mrf.mxu0
        %1795 = vmatprep.mubr.bf16.mxu0 0
        %1796 = vmatmul.mubr.bf16.gmra.mxu0 %v1696
        %v1797 = vpop.f32.mrf.mxu0
        %v1798 = vadd.f32 %v1656, %v1797
        %v1799 = vpop.f32.mrf.mxu0
        %v1800 = vpop.f32.mrf.mxu0
        %v1801 = vadd.f32 %v1656, %v1800
        %v1802 = vpop.f32.mrf.mxu0
        %1803 = vmatprep.mubr.bf16.mxu0 0
        %1804 = vmatmul.mubr.bf16.gmra.mxu0 %v1699
        %v1805 = vpop.f32.mrf.mxu0
        %v1806 = vadd.f32 %v1656, %v1805
        %v1807 = vpop.f32.mrf.mxu0
        %v1808 = vpop.f32.mrf.mxu0
        %v1809 = vadd.f32 %v1656, %v1808
        %v1810 = vpop.f32.mrf.mxu0
        %1811 = vmatprep.mubr.bf16.mxu0 0
        %1812 = vmatmul.mubr.bf16.gmra.mxu0 %v1702
        %v1813 = vpop.f32.mrf.mxu0
        %v1814 = vadd.f32 %v1656, %v1813
        %v1815 = vpop.f32.mrf.mxu0
        %v1816 = vpop.f32.mrf.mxu0
        %v1817 = vadd.f32 %v1656, %v1816
        %v1818 = vpop.f32.mrf.mxu0
        %1819 = vmatprep.mubr.bf16.mxu0 0
        %1820 = vmatmul.mubr.bf16.gmra.mxu0 %v1705
        %v1821 = vpop.f32.mrf.mxu0
        %v1822 = vadd.f32 %v1656, %v1821
        %v1823 = vpop.f32.mrf.mxu0
        %v1824 = vpop.f32.mrf.mxu0
        %v1825 = vadd.f32 %v1656, %v1824
        %v1826 = vpop.f32.mrf.mxu0
        %1827 = vmatprep.mubr.bf16.mxu0 0
        %1828 = vmatmul.mubr.bf16.gmra.mxu0 %v1708
        %v1829 = vpop.f32.mrf.mxu0
        %v1830 = vadd.f32 %v1656, %v1829
        %v1831 = vpop.f32.mrf.mxu0
        %v1832 = vpop.f32.mrf.mxu0
        %v1833 = vadd.f32 %v1656, %v1832
        %v1834 = vpop.f32.mrf.mxu0
        %1835 = vmatprep.mubr.bf16.mxu0 0
        %1836 = vmatmul.mubr.bf16.gmra.mxu0 %v1711
        %v1837 = vpop.f32.mrf.mxu0
        %v1838 = vadd.f32 %v1656, %v1837
        %v1839 = vpop.f32.mrf.mxu0
        %v1840 = vpop.f32.mrf.mxu0
        %v1841 = vadd.f32 %v1656, %v1840
        %v1842 = vpop.f32.mrf.mxu0
        %1843 = vmatprep.mubr.bf16.mxu0 0
        %1844 = vmatmul.mubr.bf16.gmra.mxu0 %v1714
        %v1845 = vpop.f32.mrf.mxu0
        %v1846 = vadd.f32 %v1656, %v1845
        %v1847 = vpop.f32.mrf.mxu0
        %v1848 = vpop.f32.mrf.mxu0
        %v1849 = vadd.f32 %v1656, %v1848
        %v1850 = vpop.f32.mrf.mxu0
        %1851 = vmatprep.mubr.bf16.mxu0 0
        %1852 = vmatmul.mubr.bf16.gmra.mxu0 %v1717
        %v1853 = vpop.f32.mrf.mxu0
        %v1854 = vadd.f32 %v1656, %v1853
        %v1855 = vpop.f32.mrf.mxu0
        %v1856 = vpop.f32.mrf.mxu0
        %v1857 = vadd.f32 %v1656, %v1856
        %v1858 = vpop.f32.mrf.mxu0
        %1859 = vmatprep.mubr.bf16.mxu0 0
        %1860 = vmatmul.mubr.bf16.gmra.mxu0 %v1720
        %v1861 = vpop.f32.mrf.mxu0
        %v1862 = vadd.f32 %v1656, %v1861
        %v1863 = vpop.f32.mrf.mxu0
        %v1864 = vpop.f32.mrf.mxu0
        %v1865 = vadd.f32 %v1656, %v1864
        %v1866 = vpop.f32.mrf.mxu0
        %1867 = vmatprep.mubr.bf16.mxu0 0
        %1868 = vmatmul.mubr.bf16.gmra.mxu0 %v1723
        %v1869 = vpop.f32.mrf.mxu0
        %v1870 = vadd.f32 %v1656, %v1869
        %v1871 = vpop.f32.mrf.mxu0
        %v1872 = vpop.f32.mrf.mxu0
        %v1873 = vadd.f32 %v1656, %v1872
        %v1874 = vpop.f32.mrf.mxu0
        %1875 = vmatprep.mubr.bf16.mxu0 0
        %1876 = vmatmul.mubr.bf16.gmra.mxu0 %v1726
        %v1877 = vpop.f32.mrf.mxu0
        %v1878 = vadd.f32 %v1656, %v1877
        %v1879 = vpop.f32.mrf.mxu0
        %v1880 = vpop.f32.mrf.mxu0
        %v1881 = vadd.f32 %v1656, %v1880
        %v1882 = vpop.f32.mrf.mxu0
        %1883 = vmatprep.mubr.bf16.mxu0 0
        %1884 = vmatmul.mubr.bf16.gmra.mxu0 %v1729
        %v1885 = vpop.f32.mrf.mxu0
        %v1886 = vadd.f32 %v1656, %v1885
        %v1887 = vpop.f32.mrf.mxu0
        %v1888 = vpop.f32.mrf.mxu0
        %v1889 = vadd.f32 %v1656, %v1888
        %v1890 = vpop.f32.mrf.mxu0
        %1891 = vdwg.mxu0
        %v1892 = vtanh.pop %v1766
        %v1893 = vtanh.pop %v1769
        %v1894 = vtanh.pop %v1774
        %v1895 = vtanh.pop %v1777
        %v1896 = vtanh.pop %v1782
        %v1897 = vtanh.pop %v1785
        %v1898 = vtanh.pop %v1790
        %v1899 = vtanh.pop %v1793
        %v1900 = vtanh.pop %v1798
        %v1901 = vtanh.pop %v1801
        %v1902 = vtanh.pop %v1806
        %v1903 = vtanh.pop %v1809
        %v1904 = vtanh.pop %v1814
        %v1905 = vtanh.pop %v1817
        %v1906 = vtanh.pop %v1822
        %v1907 = vtanh.pop %v1825
        %v1908 = vtanh.pop %v1830
        %v1909 = vtanh.pop %v1833
        %v1910 = vtanh.pop %v1838
        %v1911 = vtanh.pop %v1841
        %v1912 = vtanh.pop %v1846
        %v1913 = vtanh.pop %v1849
        %v1914 = vtanh.pop %v1854
        %v1915 = vtanh.pop %v1857
        %v1916 = vtanh.pop %v1862
        %v1917 = vtanh.pop %v1865
        %v1918 = vtanh.pop %v1870
        %v1919 = vtanh.pop %v1873
        %v1920 = vtanh.pop %v1878
        %v1921 = vtanh.pop %v1881
        %v1922 = vtanh.pop %v1886
        %v1923 = vtanh.pop %v1889
        %v1924 = vld [vmem:[%s9] sm:$0xf]
        %v1925 = vld [vmem:[%s9 + $0x4] sm:$0xf]
        %v1926 = vld [vmem:[%s9 + $0x8] sm:$0xf]
        %v1927 = vld [vmem:[%s9 + $0xc] sm:$0xf]
        %v1928 = vld [vmem:[%s9 + $0x10] sm:$0xf]
        %v1929 = vld [vmem:[%s9 + $0x14] sm:$0xf]
        %v1930 = vld [vmem:[%s9 + $0x18] sm:$0xf]
        %v1931 = vld [vmem:[%s9 + $0x1c] sm:$0xf]
        %v1932 = vld [vmem:[%s10] sm:$0x1]
        %v1933 = vpack.c.bf16 %v1893, %v1892
        %v1934 = vpack.c.bf16 %v1895, %v1894
        %v1935 = vpack.c.bf16 %v1897, %v1896
        %v1936 = vpack.c.bf16 %v1899, %v1898
        %v1937 = vpack.c.bf16 %v1901, %v1900
        %v1938 = vpack.c.bf16 %v1903, %v1902
        %v1939 = vpack.c.bf16 %v1905, %v1904
        %v1940 = vpack.c.bf16 %v1907, %v1906
        %v1941 = vpack.c.bf16 %v1909, %v1908
        %v1942 = vpack.c.bf16 %v1911, %v1910
        %v1943 = vpack.c.bf16 %v1913, %v1912
        %v1944 = vpack.c.bf16 %v1915, %v1914
        %v1945 = vpack.c.bf16 %v1917, %v1916
        %v1946 = vpack.c.bf16 %v1919, %v1918
        %v1947 = vpack.c.bf16 %v1921, %v1920
        %v1948 = vpack.c.bf16 %v1923, %v1922
        %v1950 = vlaneseq
        %v1951 = vshrl.u32 %v1950, 7
        %v1952 = vsub.s32 0, %v1951
        %v1953 = vrot.slane %v1932, %v1952
        %v1963 = vunpack.c.l.b16 %v1924
        %v1964 = vunpack.c.l.b16 %v1925
        %v1965 = vunpack.c.l.b16 %v1926
        %v1966 = vunpack.c.l.b16 %v1927
        %v1967 = vunpack.c.l.b16 %v1928
        %v1968 = vunpack.c.l.b16 %v1929
        %v1969 = vunpack.c.l.b16 %v1930
        %v1970 = vunpack.c.l.b16 %v1931
        %v1971 = vpack.c.b16 %v1964, %v1963
        %v1972 = vpack.c.b16 %v1966, %v1965
        %v1973 = vpack.c.b16 %v1968, %v1967
        %v1974 = vpack.c.b16 %v1970, %v1969
        %v1980 = vsel %vm1682, %v1933, 0
        %v1983 = vsel %vm1682, %v1934, 0
        %v1986 = vsel %vm1682, %v1935, 0
        %v1989 = vsel %vm1682, %v1936, 0
        %v1992 = vsel %vm1682, %v1937, 0
        %v1995 = vsel %vm1682, %v1938, 0
        %v1998 = vsel %vm1682, %v1939, 0
        %v2001 = vsel %vm1682, %v1940, 0
        %v2004 = vsel %vm1682, %v1941, 0
        %v2007 = vsel %vm1682, %v1942, 0
        %v2010 = vsel %vm1682, %v1943, 0
        %v2013 = vsel %vm1682, %v1944, 0
        %v2016 = vsel %vm1682, %v1945, 0
        %v2019 = vsel %vm1682, %v1946, 0
        %v2022 = vsel %vm1682, %v1947, 0
        %v2025 = vsel %vm1682, %v1948, 0
        %2027 = vmatprep.subr.bf16.mxu0 0
        %2028 = vmatpush1.bf16.msra.mxu0 0
        %2029 = vmatprep.subr.bf16.mxu0 0
        %2030 = vmatpush1.bf16.msra.mxu0 0
        %2031 = vmatprep.subr.bf16.mxu0 0
        %2032 = vmatpush1.bf16.msra.mxu0 0
        %2033 = vmatprep.subr.bf16.mxu0 0
        %2034 = vmatpush1.bf16.msra.mxu0 0
        %2035 = vmatprep.subr.bf16.mxu0 0
        %2036 = vmatpush1.bf16.msra.mxu0 %v1974
        %2037 = vmatprep.subr.bf16.mxu0 0
        %2038 = vmatpush1.bf16.msra.mxu0 %v1973
        %2039 = vmatprep.subr.bf16.mxu0 0
        %2040 = vmatpush1.bf16.msra.mxu0 %v1972
        %2041 = vmatprep.subr.bf16.mxu0 0
        %2042 = vmatpush1.bf16.msra.mxu0 %v1971
        %2043 = vmatprep.subr.bf16.mxu0 0
        %2044 = vmatpush2.bf16.msra.mxu0 0
        %2045 = vmatprep.subr.bf16.mxu0 0
        %2046 = vmatpush2.bf16.msra.mxu0 0
        %2047 = vmatprep.subr.bf16.mxu0 0
        %2048 = vmatpush2.bf16.msra.mxu0 0
        %2049 = vmatprep.subr.bf16.mxu0 0
        %2050 = vmatpush2.bf16.msra.mxu0 0
        %2051 = vmatprep.subr.bf16.mxu0 0
        %2052 = vmatpush2.bf16.msra.mxu0 0
        %2053 = vmatprep.subr.bf16.mxu0 0
        %2054 = vmatpush2.bf16.msra.mxu0 0
        %2055 = vmatprep.subr.bf16.mxu0 0
        %2056 = vmatpush2.bf16.msra.mxu0 0
        %2057 = vmatprep.subr.bf16.mxu0 0
        %2058 = vmatpush2.bf16.msra.mxu0 0
        %2059 = vmatprep.mubr.bf16.mxu0 0
        %2060 = vmatmul.mubr.bf16.gmra.mxu0 %v1980
        %v2061 = vpop.f32.mrf.mxu0
        %v2062 = vadd.f32 %v1953, %v2061
        %v2063 = vpop.f32.mrf.mxu0
        %v2064 = vpop.f32.mrf.mxu0
        %v2065 = vadd.f32 %v1953, %v2064
        %v2066 = vpop.f32.mrf.mxu0
        %2067 = vmatprep.mubr.bf16.mxu0 0
        %2068 = vmatmul.mubr.bf16.gmra.mxu0 %v1983
        %v2069 = vpop.f32.mrf.mxu0
        %v2070 = vadd.f32 %v1953, %v2069
        %v2071 = vpop.f32.mrf.mxu0
        %v2072 = vpop.f32.mrf.mxu0
        %v2073 = vadd.f32 %v1953, %v2072
        %v2074 = vpop.f32.mrf.mxu0
        %2075 = vmatprep.mubr.bf16.mxu0 0
        %2076 = vmatmul.mubr.bf16.gmra.mxu0 %v1986
        %v2077 = vpop.f32.mrf.mxu0
        %v2078 = vadd.f32 %v1953, %v2077
        %v2079 = vpop.f32.mrf.mxu0
        %v2080 = vpop.f32.mrf.mxu0
        %v2081 = vadd.f32 %v1953, %v2080
        %v2082 = vpop.f32.mrf.mxu0
        %2083 = vmatprep.mubr.bf16.mxu0 0
        %2084 = vmatmul.mubr.bf16.gmra.mxu0 %v1989
        %v2085 = vpop.f32.mrf.mxu0
        %v2086 = vadd.f32 %v1953, %v2085
        %v2087 = vpop.f32.mrf.mxu0
        %v2088 = vpop.f32.mrf.mxu0
        %v2089 = vadd.f32 %v1953, %v2088
        %v2090 = vpop.f32.mrf.mxu0
        %2091 = vmatprep.mubr.bf16.mxu0 0
        %2092 = vmatmul.mubr.bf16.gmra.mxu0 %v1992
        %v2093 = vpop.f32.mrf.mxu0
        %v2094 = vadd.f32 %v1953, %v2093
        %v2095 = vpop.f32.mrf.mxu0
        %v2096 = vpop.f32.mrf.mxu0
        %v2097 = vadd.f32 %v1953, %v2096
        %v2098 = vpop.f32.mrf.mxu0
        %2099 = vmatprep.mubr.bf16.mxu0 0
        %2100 = vmatmul.mubr.bf16.gmra.mxu0 %v1995
        %v2101 = vpop.f32.mrf.mxu0
        %v2102 = vadd.f32 %v1953, %v2101
        %v2103 = vpop.f32.mrf.mxu0
        %v2104 = vpop.f32.mrf.mxu0
        %v2105 = vadd.f32 %v1953, %v2104
        %v2106 = vpop.f32.mrf.mxu0
        %2107 = vmatprep.mubr.bf16.mxu0 0
        %2108 = vmatmul.mubr.bf16.gmra.mxu0 %v1998
        %v2109 = vpop.f32.mrf.mxu0
        %v2110 = vadd.f32 %v1953, %v2109
        %v2111 = vpop.f32.mrf.mxu0
        %v2112 = vpop.f32.mrf.mxu0
        %v2113 = vadd.f32 %v1953, %v2112
        %v2114 = vpop.f32.mrf.mxu0
        %2115 = vmatprep.mubr.bf16.mxu0 0
        %2116 = vmatmul.mubr.bf16.gmra.mxu0 %v2001
        %v2117 = vpop.f32.mrf.mxu0
        %v2118 = vadd.f32 %v1953, %v2117
        %v2119 = vpop.f32.mrf.mxu0
        %v2120 = vpop.f32.mrf.mxu0
        %v2121 = vadd.f32 %v1953, %v2120
        %v2122 = vpop.f32.mrf.mxu0
        %2123 = vmatprep.mubr.bf16.mxu0 0
        %2124 = vmatmul.mubr.bf16.gmra.mxu0 %v2004
        %v2125 = vpop.f32.mrf.mxu0
        %v2126 = vadd.f32 %v1953, %v2125
        %v2127 = vpop.f32.mrf.mxu0
        %v2128 = vpop.f32.mrf.mxu0
        %v2129 = vadd.f32 %v1953, %v2128
        %v2130 = vpop.f32.mrf.mxu0
        %2131 = vmatprep.mubr.bf16.mxu0 0
        %2132 = vmatmul.mubr.bf16.gmra.mxu0 %v2007
        %v2133 = vpop.f32.mrf.mxu0
        %v2134 = vadd.f32 %v1953, %v2133
        %v2135 = vpop.f32.mrf.mxu0
        %v2136 = vpop.f32.mrf.mxu0
        %v2137 = vadd.f32 %v1953, %v2136
        %v2138 = vpop.f32.mrf.mxu0
        %2139 = vmatprep.mubr.bf16.mxu0 0
        %2140 = vmatmul.mubr.bf16.gmra.mxu0 %v2010
        %v2141 = vpop.f32.mrf.mxu0
        %v2142 = vadd.f32 %v1953, %v2141
        %v2143 = vpop.f32.mrf.mxu0
        %v2144 = vpop.f32.mrf.mxu0
        %v2145 = vadd.f32 %v1953, %v2144
        %v2146 = vpop.f32.mrf.mxu0
        %2147 = vmatprep.mubr.bf16.mxu0 0
        %2148 = vmatmul.mubr.bf16.gmra.mxu0 %v2013
        %v2149 = vpop.f32.mrf.mxu0
        %v2150 = vadd.f32 %v1953, %v2149
        %v2151 = vpop.f32.mrf.mxu0
        %v2152 = vpop.f32.mrf.mxu0
        %v2153 = vadd.f32 %v1953, %v2152
        %v2154 = vpop.f32.mrf.mxu0
        %2155 = vmatprep.mubr.bf16.mxu0 0
        %2156 = vmatmul.mubr.bf16.gmra.mxu0 %v2016
        %v2157 = vpop.f32.mrf.mxu0
        %v2158 = vadd.f32 %v1953, %v2157
        %v2159 = vpop.f32.mrf.mxu0
        %v2160 = vpop.f32.mrf.mxu0
        %v2161 = vadd.f32 %v1953, %v2160
        %v2162 = vpop.f32.mrf.mxu0
        %2163 = vmatprep.mubr.bf16.mxu0 0
        %2164 = vmatmul.mubr.bf16.gmra.mxu0 %v2019
        %v2165 = vpop.f32.mrf.mxu0
        %v2166 = vadd.f32 %v1953, %v2165
        %v2167 = vpop.f32.mrf.mxu0
        %v2168 = vpop.f32.mrf.mxu0
        %v2169 = vadd.f32 %v1953, %v2168
        %v2170 = vpop.f32.mrf.mxu0
        %2171 = vmatprep.mubr.bf16.mxu0 0
        %2172 = vmatmul.mubr.bf16.gmra.mxu0 %v2022
        %v2173 = vpop.f32.mrf.mxu0
        %v2174 = vadd.f32 %v1953, %v2173
        %v2175 = vpop.f32.mrf.mxu0
        %v2176 = vpop.f32.mrf.mxu0
        %v2177 = vadd.f32 %v1953, %v2176
        %v2178 = vpop.f32.mrf.mxu0
        %2179 = vmatprep.mubr.bf16.mxu0 0
        %2180 = vmatmul.mubr.bf16.gmra.mxu0 %v2025
        %v2181 = vpop.f32.mrf.mxu0
        %v2182 = vadd.f32 %v1953, %v2181
        %v2183 = vpop.f32.mrf.mxu0
        %v2184 = vpop.f32.mrf.mxu0
        %v2185 = vadd.f32 %v1953, %v2184
        %v2186 = vpop.f32.mrf.mxu0
        %2187 = vdwg.mxu0
        %v2188 = vtanh.pop %v2062
        %v2189 = vtanh.pop %v2065
        %v2190 = vtanh.pop %v2070
        %v2191 = vtanh.pop %v2073
        %v2192 = vtanh.pop %v2078
        %v2193 = vtanh.pop %v2081
        %v2194 = vtanh.pop %v2086
        %v2195 = vtanh.pop %v2089
        %v2196 = vtanh.pop %v2094
        %v2197 = vtanh.pop %v2097
        %v2198 = vtanh.pop %v2102
        %v2199 = vtanh.pop %v2105
        %v2200 = vtanh.pop %v2110
        %v2201 = vtanh.pop %v2113
        %v2202 = vtanh.pop %v2118
        %v2203 = vtanh.pop %v2121
        %v2204 = vtanh.pop %v2126
        %v2205 = vtanh.pop %v2129
        %v2206 = vtanh.pop %v2134
        %v2207 = vtanh.pop %v2137
        %v2208 = vtanh.pop %v2142
        %v2209 = vtanh.pop %v2145
        %v2210 = vtanh.pop %v2150
        %v2211 = vtanh.pop %v2153
        %v2212 = vtanh.pop %v2158
        %v2213 = vtanh.pop %v2161
        %v2214 = vtanh.pop %v2166
        %v2215 = vtanh.pop %v2169
        %v2216 = vtanh.pop %v2174
        %v2217 = vtanh.pop %v2177
        %v2218 = vtanh.pop %v2182
        %v2219 = vtanh.pop %v2185
        %v2220 = vld [vmem:[#allocation8] sm:$0xff]
        %v2221 = vld [vmem:[#allocation8 + $0x8] sm:$0xff]
        %v2222 = vld [vmem:[#allocation8 + $0x10] sm:$0xff]
        %v2223 = vld [vmem:[#allocation8 + $0x18] sm:$0xff]
        %v2224 = vld [vmem:[#allocation8 + $0x20] sm:$0xff]
        %v2225 = vld [vmem:[#allocation8 + $0x28] sm:$0xff]
        %v2226 = vld [vmem:[#allocation8 + $0x30] sm:$0xff]
        %v2227 = vld [vmem:[#allocation8 + $0x38] sm:$0xff]
        %v2228 = vld [vmem:[#allocation8 + $0x40] sm:$0xff]
        %v2229 = vld [vmem:[#allocation8 + $0x48] sm:$0xff]
        %v2230 = vld [vmem:[#allocation8 + $0x50] sm:$0xff]
        %v2231 = vld [vmem:[#allocation8 + $0x58] sm:$0xff]
        %v2232 = vld [vmem:[#allocation8 + $0x60] sm:$0xff]
        %v2233 = vld [vmem:[#allocation8 + $0x68] sm:$0xff]
        %v2234 = vld [vmem:[#allocation8 + $0x70] sm:$0xff]
        %v2235 = vld [vmem:[#allocation8 + $0x78] sm:$0xff]
        %v2236 = vld [vmem:[%s12] sm:$0x3]
        %v2237 = vpack.c.bf16 %v2189, %v2188
        %v2238 = vpack.c.bf16 %v2191, %v2190
        %v2239 = vpack.c.bf16 %v2193, %v2192
        %v2240 = vpack.c.bf16 %v2195, %v2194
        %v2241 = vpack.c.bf16 %v2197, %v2196
        %v2242 = vpack.c.bf16 %v2199, %v2198
        %v2243 = vpack.c.bf16 %v2201, %v2200
        %v2244 = vpack.c.bf16 %v2203, %v2202
        %v2245 = vpack.c.bf16 %v2205, %v2204
        %v2246 = vpack.c.bf16 %v2207, %v2206
        %v2247 = vpack.c.bf16 %v2209, %v2208
        %v2248 = vpack.c.bf16 %v2211, %v2210
        %v2249 = vpack.c.bf16 %v2213, %v2212
        %v2250 = vpack.c.bf16 %v2215, %v2214
        %v2251 = vpack.c.bf16 %v2217, %v2216
        %v2252 = vpack.c.bf16 %v2219, %v2218
        %v2254 = vlaneseq
        %v2255 = vshrl.u32 %v2254, 7
        %v2256 = vsub.s32 0, %v2255
        %v2257 = vrot.slane %v2236, %v2256
        %v2258 = vlaneseq
        %v2259 = vshrl.u32 %v2258, 7
        %v2260 = vsub.s32 1, %v2259
        %v2261 = vrot.slane %v2236, %v2260
        %v2280 = vunpack.c.l.b16 %v2220
        %v2281 = vunpack.c.h.b16 %v2220
        %v2282 = vunpack.c.l.b16 %v2221
        %v2283 = vunpack.c.h.b16 %v2221
        %v2284 = vunpack.c.l.b16 %v2222
        %v2285 = vunpack.c.h.b16 %v2222
        %v2286 = vunpack.c.l.b16 %v2223
        %v2287 = vunpack.c.h.b16 %v2223
        %v2288 = vunpack.c.l.b16 %v2224
        %v2289 = vunpack.c.h.b16 %v2224
        %v2290 = vunpack.c.l.b16 %v2225
        %v2291 = vunpack.c.h.b16 %v2225
        %v2292 = vunpack.c.l.b16 %v2226
        %v2293 = vunpack.c.h.b16 %v2226
        %v2294 = vunpack.c.l.b16 %v2227
        %v2295 = vunpack.c.h.b16 %v2227
        %v2296 = vunpack.c.l.b16 %v2228
        %v2297 = vunpack.c.h.b16 %v2228
        %v2298 = vunpack.c.l.b16 %v2229
        %v2299 = vunpack.c.h.b16 %v2229
        %v2300 = vunpack.c.l.b16 %v2230
        %v2301 = vunpack.c.h.b16 %v2230
        %v2302 = vunpack.c.l.b16 %v2231
        %v2303 = vunpack.c.h.b16 %v2231
        %v2304 = vunpack.c.l.b16 %v2232
        %v2305 = vunpack.c.h.b16 %v2232
        %v2306 = vunpack.c.l.b16 %v2233
        %v2307 = vunpack.c.h.b16 %v2233
        %v2308 = vunpack.c.l.b16 %v2234
        %v2309 = vunpack.c.h.b16 %v2234
        %v2310 = vunpack.c.l.b16 %v2235
        %v2311 = vunpack.c.h.b16 %v2235
        %v2312 = vpack.c.b16 %v2282, %v2280
        %v2313 = vpack.c.b16 %v2283, %v2281
        %v2314 = vpack.c.b16 %v2286, %v2284
        %v2315 = vpack.c.b16 %v2287, %v2285
        %v2316 = vpack.c.b16 %v2290, %v2288
        %v2317 = vpack.c.b16 %v2291, %v2289
        %v2318 = vpack.c.b16 %v2294, %v2292
        %v2319 = vpack.c.b16 %v2295, %v2293
        %v2320 = vpack.c.b16 %v2298, %v2296
        %v2321 = vpack.c.b16 %v2299, %v2297
        %v2322 = vpack.c.b16 %v2302, %v2300
        %v2323 = vpack.c.b16 %v2303, %v2301
        %v2324 = vpack.c.b16 %v2306, %v2304
        %v2325 = vpack.c.b16 %v2307, %v2305
        %v2326 = vpack.c.b16 %v2310, %v2308
        %v2327 = vpack.c.b16 %v2311, %v2309
        %2344 = vmatprep.subr.bf16.mxu0 %v2327
        %2345 = vmatpush1.bf16.msra.mxu0 %v2326
        %2346 = vmatprep.subr.bf16.mxu0 %v2325
        %2347 = vmatpush1.bf16.msra.mxu0 %v2324
        %2348 = vmatprep.subr.bf16.mxu0 %v2323
        %2349 = vmatpush1.bf16.msra.mxu0 %v2322
        %2350 = vmatprep.subr.bf16.mxu0 %v2321
        %2351 = vmatpush1.bf16.msra.mxu0 %v2320
        %2352 = vmatprep.subr.bf16.mxu0 %v2319
        %2353 = vmatpush1.bf16.msra.mxu0 %v2318
        %2354 = vmatprep.subr.bf16.mxu0 %v2317
        %2355 = vmatpush1.bf16.msra.mxu0 %v2316
        %2356 = vmatprep.subr.bf16.mxu0 %v2315
        %2357 = vmatpush1.bf16.msra.mxu0 %v2314
        %2358 = vmatprep.subr.bf16.mxu0 %v2313
        %2359 = vmatpush1.bf16.msra.mxu0 %v2312
        %2360 = vmatprep.subr.bf16.mxu0 0
        %2361 = vmatpush2.bf16.msra.mxu0 0
        %2362 = vmatprep.subr.bf16.mxu0 0
        %2363 = vmatpush2.bf16.msra.mxu0 0
        %2364 = vmatprep.subr.bf16.mxu0 0
        %2365 = vmatpush2.bf16.msra.mxu0 0
        %2366 = vmatprep.subr.bf16.mxu0 0
        %2367 = vmatpush2.bf16.msra.mxu0 0
        %2368 = vmatprep.subr.bf16.mxu0 0
        %2369 = vmatpush2.bf16.msra.mxu0 0
        %2370 = vmatprep.subr.bf16.mxu0 0
        %2371 = vmatpush2.bf16.msra.mxu0 0
        %2372 = vmatprep.subr.bf16.mxu0 0
        %2373 = vmatpush2.bf16.msra.mxu0 0
        %2374 = vmatprep.subr.bf16.mxu0 0
        %2375 = vmatpush2.bf16.msra.mxu0 0
        %2376 = vmatprep.mubr.bf16.mxu0 0
        %2377 = vmatmul.mubr.bf16.gmra.mxu0 %v2237
        %v2378 = vpop.f32.mrf.mxu0
        %v2379 = vadd.f32 %v2257, %v2378
        %v2380 = vpop.f32.mrf.mxu0
        %v2381 = vadd.f32 %v2261, %v2380
        %v2382 = vpop.f32.mrf.mxu0
        %v2383 = vadd.f32 %v2257, %v2382
        %v2384 = vpop.f32.mrf.mxu0
        %v2385 = vadd.f32 %v2261, %v2384
        %2386 = vmatprep.mubr.bf16.mxu0 0
        %2387 = vmatmul.mubr.bf16.gmra.mxu0 %v2238
        %v2388 = vpop.f32.mrf.mxu0
        %v2389 = vadd.f32 %v2257, %v2388
        %v2390 = vpop.f32.mrf.mxu0
        %v2391 = vadd.f32 %v2261, %v2390
        %v2392 = vpop.f32.mrf.mxu0
        %v2393 = vadd.f32 %v2257, %v2392
        %v2394 = vpop.f32.mrf.mxu0
        %v2395 = vadd.f32 %v2261, %v2394
        %2396 = vmatprep.mubr.bf16.mxu0 0
        %2397 = vmatmul.mubr.bf16.gmra.mxu0 %v2239
        %v2398 = vpop.f32.mrf.mxu0
        %v2399 = vadd.f32 %v2257, %v2398
        %v2400 = vpop.f32.mrf.mxu0
        %v2401 = vadd.f32 %v2261, %v2400
        %v2402 = vpop.f32.mrf.mxu0
        %v2403 = vadd.f32 %v2257, %v2402
        %v2404 = vpop.f32.mrf.mxu0
        %v2405 = vadd.f32 %v2261, %v2404
        %2406 = vmatprep.mubr.bf16.mxu0 0
        %2407 = vmatmul.mubr.bf16.gmra.mxu0 %v2240
        %v2408 = vpop.f32.mrf.mxu0
        %v2409 = vadd.f32 %v2257, %v2408
        %v2410 = vpop.f32.mrf.mxu0
        %v2411 = vadd.f32 %v2261, %v2410
        %v2412 = vpop.f32.mrf.mxu0
        %v2413 = vadd.f32 %v2257, %v2412
        %v2414 = vpop.f32.mrf.mxu0
        %v2415 = vadd.f32 %v2261, %v2414
        %2416 = vmatprep.mubr.bf16.mxu0 0
        %2417 = vmatmul.mubr.bf16.gmra.mxu0 %v2241
        %v2418 = vpop.f32.mrf.mxu0
        %v2419 = vadd.f32 %v2257, %v2418
        %v2420 = vpop.f32.mrf.mxu0
        %v2421 = vadd.f32 %v2261, %v2420
        %v2422 = vpop.f32.mrf.mxu0
        %v2423 = vadd.f32 %v2257, %v2422
        %v2424 = vpop.f32.mrf.mxu0
        %v2425 = vadd.f32 %v2261, %v2424
        %2426 = vmatprep.mubr.bf16.mxu0 0
        %2427 = vmatmul.mubr.bf16.gmra.mxu0 %v2242
        %v2428 = vpop.f32.mrf.mxu0
        %v2429 = vadd.f32 %v2257, %v2428
        %v2430 = vpop.f32.mrf.mxu0
        %v2431 = vadd.f32 %v2261, %v2430
        %v2432 = vpop.f32.mrf.mxu0
        %v2433 = vadd.f32 %v2257, %v2432
        %v2434 = vpop.f32.mrf.mxu0
        %v2435 = vadd.f32 %v2261, %v2434
        %2436 = vmatprep.mubr.bf16.mxu0 0
        %2437 = vmatmul.mubr.bf16.gmra.mxu0 %v2243
        %v2438 = vpop.f32.mrf.mxu0
        %v2439 = vadd.f32 %v2257, %v2438
        %v2440 = vpop.f32.mrf.mxu0
        %v2441 = vadd.f32 %v2261, %v2440
        %v2442 = vpop.f32.mrf.mxu0
        %v2443 = vadd.f32 %v2257, %v2442
        %v2444 = vpop.f32.mrf.mxu0
        %v2445 = vadd.f32 %v2261, %v2444
        %2446 = vmatprep.mubr.bf16.mxu0 0
        %2447 = vmatmul.mubr.bf16.gmra.mxu0 %v2244
        %v2448 = vpop.f32.mrf.mxu0
        %v2449 = vadd.f32 %v2257, %v2448
        %v2450 = vpop.f32.mrf.mxu0
        %v2451 = vadd.f32 %v2261, %v2450
        %v2452 = vpop.f32.mrf.mxu0
        %v2453 = vadd.f32 %v2257, %v2452
        %v2454 = vpop.f32.mrf.mxu0
        %v2455 = vadd.f32 %v2261, %v2454
        %2456 = vmatprep.mubr.bf16.mxu0 0
        %2457 = vmatmul.mubr.bf16.gmra.mxu0 %v2245
        %v2458 = vpop.f32.mrf.mxu0
        %v2459 = vadd.f32 %v2257, %v2458
        %v2460 = vpop.f32.mrf.mxu0
        %v2461 = vadd.f32 %v2261, %v2460
        %v2462 = vpop.f32.mrf.mxu0
        %v2463 = vadd.f32 %v2257, %v2462
        %v2464 = vpop.f32.mrf.mxu0
        %v2465 = vadd.f32 %v2261, %v2464
        %2466 = vmatprep.mubr.bf16.mxu0 0
        %2467 = vmatmul.mubr.bf16.gmra.mxu0 %v2246
        %v2468 = vpop.f32.mrf.mxu0
        %v2469 = vadd.f32 %v2257, %v2468
        %v2470 = vpop.f32.mrf.mxu0
        %v2471 = vadd.f32 %v2261, %v2470
        %v2472 = vpop.f32.mrf.mxu0
        %v2473 = vadd.f32 %v2257, %v2472
        %v2474 = vpop.f32.mrf.mxu0
        %v2475 = vadd.f32 %v2261, %v2474
        %2476 = vmatprep.mubr.bf16.mxu0 0
        %2477 = vmatmul.mubr.bf16.gmra.mxu0 %v2247
        %v2478 = vpop.f32.mrf.mxu0
        %v2479 = vadd.f32 %v2257, %v2478
        %v2480 = vpop.f32.mrf.mxu0
        %v2481 = vadd.f32 %v2261, %v2480
        %v2482 = vpop.f32.mrf.mxu0
        %v2483 = vadd.f32 %v2257, %v2482
        %v2484 = vpop.f32.mrf.mxu0
        %v2485 = vadd.f32 %v2261, %v2484
        %2486 = vmatprep.mubr.bf16.mxu0 0
        %2487 = vmatmul.mubr.bf16.gmra.mxu0 %v2248
        %v2488 = vpop.f32.mrf.mxu0
        %v2489 = vadd.f32 %v2257, %v2488
        %v2490 = vpop.f32.mrf.mxu0
        %v2491 = vadd.f32 %v2261, %v2490
        %v2492 = vpop.f32.mrf.mxu0
        %v2493 = vadd.f32 %v2257, %v2492
        %v2494 = vpop.f32.mrf.mxu0
        %v2495 = vadd.f32 %v2261, %v2494
        %2496 = vmatprep.mubr.bf16.mxu0 0
        %2497 = vmatmul.mubr.bf16.gmra.mxu0 %v2249
        %v2498 = vpop.f32.mrf.mxu0
        %v2499 = vadd.f32 %v2257, %v2498
        %v2500 = vpop.f32.mrf.mxu0
        %v2501 = vadd.f32 %v2261, %v2500
        %v2502 = vpop.f32.mrf.mxu0
        %v2503 = vadd.f32 %v2257, %v2502
        %v2504 = vpop.f32.mrf.mxu0
        %v2505 = vadd.f32 %v2261, %v2504
        %2506 = vmatprep.mubr.bf16.mxu0 0
        %2507 = vmatmul.mubr.bf16.gmra.mxu0 %v2250
        %v2508 = vpop.f32.mrf.mxu0
        %v2509 = vadd.f32 %v2257, %v2508
        %v2510 = vpop.f32.mrf.mxu0
        %v2511 = vadd.f32 %v2261, %v2510
        %v2512 = vpop.f32.mrf.mxu0
        %v2513 = vadd.f32 %v2257, %v2512
        %v2514 = vpop.f32.mrf.mxu0
        %v2515 = vadd.f32 %v2261, %v2514
        %2516 = vmatprep.mubr.bf16.mxu0 0
        %2517 = vmatmul.mubr.bf16.gmra.mxu0 %v2251
        %v2518 = vpop.f32.mrf.mxu0
        %v2519 = vadd.f32 %v2257, %v2518
        %v2520 = vpop.f32.mrf.mxu0
        %v2521 = vadd.f32 %v2261, %v2520
        %v2522 = vpop.f32.mrf.mxu0
        %v2523 = vadd.f32 %v2257, %v2522
        %v2524 = vpop.f32.mrf.mxu0
        %v2525 = vadd.f32 %v2261, %v2524
        %2526 = vmatprep.mubr.bf16.mxu0 0
        %2527 = vmatmul.mubr.bf16.gmra.mxu0 %v2252
        %v2528 = vpop.f32.mrf.mxu0
        %v2529 = vadd.f32 %v2257, %v2528
        %v2530 = vpop.f32.mrf.mxu0
        %v2531 = vadd.f32 %v2261, %v2530
        %v2532 = vpop.f32.mrf.mxu0
        %v2533 = vadd.f32 %v2257, %v2532
        %v2534 = vpop.f32.mrf.mxu0
        %v2535 = vadd.f32 %v2261, %v2534
        %2536 = vdwg.mxu0
        %v2537 = vtanh.pop %v2379
        %v2538 = vtanh.pop %v2381
        %v2539 = vtanh.pop %v2383
        %v2540 = vtanh.pop %v2385
        %v2541 = vtanh.pop %v2389
        %v2542 = vtanh.pop %v2391
        %v2543 = vtanh.pop %v2393
        %v2544 = vtanh.pop %v2395
        %v2545 = vtanh.pop %v2399
        %v2546 = vtanh.pop %v2401
        %v2547 = vtanh.pop %v2403
        %v2548 = vtanh.pop %v2405
        %v2549 = vtanh.pop %v2409
        %v2550 = vtanh.pop %v2411
        %v2551 = vtanh.pop %v2413
        %v2552 = vtanh.pop %v2415
        %v2553 = vtanh.pop %v2419
        %v2554 = vtanh.pop %v2421
        %v2555 = vtanh.pop %v2423
        %v2556 = vtanh.pop %v2425
        %v2557 = vtanh.pop %v2429
        %v2558 = vtanh.pop %v2431
        %v2559 = vtanh.pop %v2433
        %v2560 = vtanh.pop %v2435
        %v2561 = vtanh.pop %v2439
        %v2562 = vtanh.pop %v2441
        %v2563 = vtanh.pop %v2443
        %v2564 = vtanh.pop %v2445
        %v2565 = vtanh.pop %v2449
        %v2566 = vtanh.pop %v2451
        %v2567 = vtanh.pop %v2453
        %v2568 = vtanh.pop %v2455
        %v2569 = vtanh.pop %v2459
        %v2570 = vtanh.pop %v2461
        %v2571 = vtanh.pop %v2463
        %v2572 = vtanh.pop %v2465
        %v2573 = vtanh.pop %v2469
        %v2574 = vtanh.pop %v2471
        %v2575 = vtanh.pop %v2473
        %v2576 = vtanh.pop %v2475
        %v2577 = vtanh.pop %v2479
        %v2578 = vtanh.pop %v2481
        %v2579 = vtanh.pop %v2483
        %v2580 = vtanh.pop %v2485
        %v2581 = vtanh.pop %v2489
        %v2582 = vtanh.pop %v2491
        %v2583 = vtanh.pop %v2493
        %v2584 = vtanh.pop %v2495
        %v2585 = vtanh.pop %v2499
        %v2586 = vtanh.pop %v2501
        %v2587 = vtanh.pop %v2503
        %v2588 = vtanh.pop %v2505
        %v2589 = vtanh.pop %v2509
        %v2590 = vtanh.pop %v2511
        %v2591 = vtanh.pop %v2513
        %v2592 = vtanh.pop %v2515
        %v2593 = vtanh.pop %v2519
        %v2594 = vtanh.pop %v2521
        %v2595 = vtanh.pop %v2523
        %v2596 = vtanh.pop %v2525
        %v2597 = vtanh.pop %v2529
        %v2598 = vtanh.pop %v2531
        %v2599 = vtanh.pop %v2533
        %v2600 = vtanh.pop %v2535
        %v2601 = vld [vmem:[#allocation10] sm:$0xf]
        %v2602 = vld [vmem:[#allocation10 + $0x4] sm:$0xf]
        %v2603 = vld [vmem:[#allocation10 + $0x8] sm:$0xf]
        %v2604 = vld [vmem:[#allocation10 + $0xc] sm:$0xf]
        %v2605 = vld [vmem:[#allocation10 + $0x10] sm:$0xf]
        %v2606 = vld [vmem:[#allocation10 + $0x14] sm:$0xf]
        %v2607 = vld [vmem:[#allocation10 + $0x18] sm:$0xf]
        %v2608 = vld [vmem:[#allocation10 + $0x1c] sm:$0xf]
        %v2609 = vld [vmem:[#allocation10 + $0x20] sm:$0xf]
        %v2610 = vld [vmem:[#allocation10 + $0x24] sm:$0xf]
        %v2611 = vld [vmem:[#allocation10 + $0x28] sm:$0xf]
        %v2612 = vld [vmem:[#allocation10 + $0x2c] sm:$0xf]
        %v2613 = vld [vmem:[#allocation10 + $0x30] sm:$0xf]
        %v2614 = vld [vmem:[#allocation10 + $0x34] sm:$0xf]
        %v2615 = vld [vmem:[#allocation10 + $0x38] sm:$0xf]
        %v2616 = vld [vmem:[#allocation10 + $0x3c] sm:$0xf]
        %v2617 = vld [vmem:[#allocation10 + $0x40] sm:$0xf]
        %v2618 = vld [vmem:[#allocation10 + $0x44] sm:$0xf]
        %v2619 = vld [vmem:[#allocation10 + $0x48] sm:$0xf]
        %v2620 = vld [vmem:[#allocation10 + $0x4c] sm:$0xf]
        %v2621 = vld [vmem:[#allocation10 + $0x50] sm:$0xf]
        %v2622 = vld [vmem:[#allocation10 + $0x54] sm:$0xf]
        %v2623 = vld [vmem:[#allocation10 + $0x58] sm:$0xf]
        %v2624 = vld [vmem:[#allocation10 + $0x5c] sm:$0xf]
        %v2625 = vld [vmem:[#allocation10 + $0x60] sm:$0xf]
        %v2626 = vld [vmem:[#allocation10 + $0x64] sm:$0xf]
        %v2627 = vld [vmem:[#allocation10 + $0x68] sm:$0xf]
        %v2628 = vld [vmem:[#allocation10 + $0x6c] sm:$0xf]
        %v2629 = vld [vmem:[#allocation10 + $0x70] sm:$0xf]
        %v2630 = vld [vmem:[#allocation10 + $0x74] sm:$0xf]
        %v2631 = vld [vmem:[#allocation10 + $0x78] sm:$0xf]
        %v2632 = vld [vmem:[#allocation10 + $0x7c] sm:$0xf]
        %v2633 = vld [vmem:[%s14] sm:$0x1]
        %v2634 = vpack.c.bf16 %v2539, %v2537
        %v2635 = vpack.c.bf16 %v2540, %v2538
        %v2636 = vpack.c.bf16 %v2543, %v2541
        %v2637 = vpack.c.bf16 %v2544, %v2542
        %v2638 = vpack.c.bf16 %v2547, %v2545
        %v2639 = vpack.c.bf16 %v2548, %v2546
        %v2640 = vpack.c.bf16 %v2551, %v2549
        %v2641 = vpack.c.bf16 %v2552, %v2550
        %v2642 = vpack.c.bf16 %v2555, %v2553
        %v2643 = vpack.c.bf16 %v2556, %v2554
        %v2644 = vpack.c.bf16 %v2559, %v2557
        %v2645 = vpack.c.bf16 %v2560, %v2558
        %v2646 = vpack.c.bf16 %v2563, %v2561
        %v2647 = vpack.c.bf16 %v2564, %v2562
        %v2648 = vpack.c.bf16 %v2567, %v2565
        %v2649 = vpack.c.bf16 %v2568, %v2566
        %v2650 = vpack.c.bf16 %v2571, %v2569
        %v2651 = vpack.c.bf16 %v2572, %v2570
        %v2652 = vpack.c.bf16 %v2575, %v2573
        %v2653 = vpack.c.bf16 %v2576, %v2574
        %v2654 = vpack.c.bf16 %v2579, %v2577
        %v2655 = vpack.c.bf16 %v2580, %v2578
        %v2656 = vpack.c.bf16 %v2583, %v2581
        %v2657 = vpack.c.bf16 %v2584, %v2582
        %v2658 = vpack.c.bf16 %v2587, %v2585
        %v2659 = vpack.c.bf16 %v2588, %v2586
        %v2660 = vpack.c.bf16 %v2591, %v2589
        %v2661 = vpack.c.bf16 %v2592, %v2590
        %v2662 = vpack.c.bf16 %v2595, %v2593
        %v2663 = vpack.c.bf16 %v2596, %v2594
        %v2664 = vpack.c.bf16 %v2599, %v2597
        %v2665 = vpack.c.bf16 %v2600, %v2598
        %v2667 = vlaneseq
        %v2668 = vshrl.u32 %v2667, 7
        %v2669 = vsub.s32 0, %v2668
        %v2670 = vrot.slane %v2633, %v2669
        %v2704 = vunpack.c.l.b16 %v2601
        %v2705 = vunpack.c.l.b16 %v2602
        %v2706 = vunpack.c.l.b16 %v2603
        %v2707 = vunpack.c.l.b16 %v2604
        %v2708 = vunpack.c.l.b16 %v2605
        %v2709 = vunpack.c.l.b16 %v2606
        %v2710 = vunpack.c.l.b16 %v2607
        %v2711 = vunpack.c.l.b16 %v2608
        %v2712 = vunpack.c.l.b16 %v2609
        %v2713 = vunpack.c.l.b16 %v2610
        %v2714 = vunpack.c.l.b16 %v2611
        %v2715 = vunpack.c.l.b16 %v2612
        %v2716 = vunpack.c.l.b16 %v2613
        %v2717 = vunpack.c.l.b16 %v2614
        %v2718 = vunpack.c.l.b16 %v2615
        %v2719 = vunpack.c.l.b16 %v2616
        %v2720 = vunpack.c.l.b16 %v2617
        %v2721 = vunpack.c.l.b16 %v2618
        %v2722 = vunpack.c.l.b16 %v2619
        %v2723 = vunpack.c.l.b16 %v2620
        %v2724 = vunpack.c.l.b16 %v2621
        %v2725 = vunpack.c.l.b16 %v2622
        %v2726 = vunpack.c.l.b16 %v2623
        %v2727 = vunpack.c.l.b16 %v2624
        %v2728 = vunpack.c.l.b16 %v2625
        %v2729 = vunpack.c.l.b16 %v2626
        %v2730 = vunpack.c.l.b16 %v2627
        %v2731 = vunpack.c.l.b16 %v2628
        %v2732 = vunpack.c.l.b16 %v2629
        %v2733 = vunpack.c.l.b16 %v2630
        %v2734 = vunpack.c.l.b16 %v2631
        %v2735 = vunpack.c.l.b16 %v2632
        %v2736 = vpack.c.b16 %v2705, %v2704
        %v2737 = vpack.c.b16 %v2707, %v2706
        %v2738 = vpack.c.b16 %v2709, %v2708
        %v2739 = vpack.c.b16 %v2711, %v2710
        %v2740 = vpack.c.b16 %v2713, %v2712
        %v2741 = vpack.c.b16 %v2715, %v2714
        %v2742 = vpack.c.b16 %v2717, %v2716
        %v2743 = vpack.c.b16 %v2719, %v2718
        %v2744 = vpack.c.b16 %v2721, %v2720
        %v2745 = vpack.c.b16 %v2723, %v2722
        %v2746 = vpack.c.b16 %v2725, %v2724
        %v2747 = vpack.c.b16 %v2727, %v2726
        %v2748 = vpack.c.b16 %v2729, %v2728
        %v2749 = vpack.c.b16 %v2731, %v2730
        %v2750 = vpack.c.b16 %v2733, %v2732
        %v2751 = vpack.c.b16 %v2735, %v2734
        %2768 = vmatprep.subr.bf16.mxu0 0
        %2769 = vmatpush1.bf16.msra.mxu0 %v2743
        %2770 = vmatprep.subr.bf16.mxu0 0
        %2771 = vmatpush1.bf16.msra.mxu0 %v2742
        %2772 = vmatprep.subr.bf16.mxu0 0
        %2773 = vmatpush1.bf16.msra.mxu0 %v2741
        %2774 = vmatprep.subr.bf16.mxu0 0
        %2775 = vmatpush1.bf16.msra.mxu0 %v2740
        %2776 = vmatprep.subr.bf16.mxu0 0
        %2777 = vmatpush1.bf16.msra.mxu0 %v2739
        %2778 = vmatprep.subr.bf16.mxu0 0
        %2779 = vmatpush1.bf16.msra.mxu0 %v2738
        %2780 = vmatprep.subr.bf16.mxu0 0
        %2781 = vmatpush1.bf16.msra.mxu0 %v2737
        %2782 = vmatprep.subr.bf16.mxu0 0
        %2783 = vmatpush1.bf16.msra.mxu0 %v2736
        %2784 = vmatprep.subr.bf16.mxu0 0
        %2785 = vmatpush2.bf16.msra.mxu0 %v2751
        %2786 = vmatprep.subr.bf16.mxu0 0
        %2787 = vmatpush2.bf16.msra.mxu0 %v2750
        %2788 = vmatprep.subr.bf16.mxu0 0
        %2789 = vmatpush2.bf16.msra.mxu0 %v2749
        %2790 = vmatprep.subr.bf16.mxu0 0
        %2791 = vmatpush2.bf16.msra.mxu0 %v2748
        %2792 = vmatprep.subr.bf16.mxu0 0
        %2793 = vmatpush2.bf16.msra.mxu0 %v2747
        %2794 = vmatprep.subr.bf16.mxu0 0
        %2795 = vmatpush2.bf16.msra.mxu0 %v2746
        %2796 = vmatprep.subr.bf16.mxu0 0
        %2797 = vmatpush2.bf16.msra.mxu0 %v2745
        %2798 = vmatprep.subr.bf16.mxu0 0
        %2799 = vmatpush2.bf16.msra.mxu0 %v2744
        %2800 = vmatprep.mubr.bf16.mxu0 %v2635
        %2801 = vmatmul.mubr.bf16.gmra.mxu0 %v2634
        %v2802 = vpop.f32.mrf.mxu0
        %v2803 = vadd.f32 %v2670, %v2802
        %v2804 = vpop.f32.mrf.mxu0
        %v2805 = vpop.f32.mrf.mxu0
        %v2806 = vadd.f32 %v2670, %v2805
        %v2807 = vpop.f32.mrf.mxu0
        %2808 = vmatprep.mubr.bf16.mxu0 %v2637
        %2809 = vmatmul.mubr.bf16.gmra.mxu0 %v2636
        %v2810 = vpop.f32.mrf.mxu0
        %v2811 = vadd.f32 %v2670, %v2810
        %v2812 = vpop.f32.mrf.mxu0
        %v2813 = vpop.f32.mrf.mxu0
        %v2814 = vadd.f32 %v2670, %v2813
        %v2815 = vpop.f32.mrf.mxu0
        %2816 = vmatprep.mubr.bf16.mxu0 %v2639
        %2817 = vmatmul.mubr.bf16.gmra.mxu0 %v2638
        %v2818 = vpop.f32.mrf.mxu0
        %v2819 = vadd.f32 %v2670, %v2818
        %v2820 = vpop.f32.mrf.mxu0
        %v2821 = vpop.f32.mrf.mxu0
        %v2822 = vadd.f32 %v2670, %v2821
        %v2823 = vpop.f32.mrf.mxu0
        %2824 = vmatprep.mubr.bf16.mxu0 %v2641
        %2825 = vmatmul.mubr.bf16.gmra.mxu0 %v2640
        %v2826 = vpop.f32.mrf.mxu0
        %v2827 = vadd.f32 %v2670, %v2826
        %v2828 = vpop.f32.mrf.mxu0
        %v2829 = vpop.f32.mrf.mxu0
        %v2830 = vadd.f32 %v2670, %v2829
        %v2831 = vpop.f32.mrf.mxu0
        %2832 = vmatprep.mubr.bf16.mxu0 %v2643
        %2833 = vmatmul.mubr.bf16.gmra.mxu0 %v2642
        %v2834 = vpop.f32.mrf.mxu0
        %v2835 = vadd.f32 %v2670, %v2834
        %v2836 = vpop.f32.mrf.mxu0
        %v2837 = vpop.f32.mrf.mxu0
        %v2838 = vadd.f32 %v2670, %v2837
        %v2839 = vpop.f32.mrf.mxu0
        %2840 = vmatprep.mubr.bf16.mxu0 %v2645
        %2841 = vmatmul.mubr.bf16.gmra.mxu0 %v2644
        %v2842 = vpop.f32.mrf.mxu0
        %v2843 = vadd.f32 %v2670, %v2842
        %v2844 = vpop.f32.mrf.mxu0
        %v2845 = vpop.f32.mrf.mxu0
        %v2846 = vadd.f32 %v2670, %v2845
        %v2847 = vpop.f32.mrf.mxu0
        %2848 = vmatprep.mubr.bf16.mxu0 %v2647
        %2849 = vmatmul.mubr.bf16.gmra.mxu0 %v2646
        %v2850 = vpop.f32.mrf.mxu0
        %v2851 = vadd.f32 %v2670, %v2850
        %v2852 = vpop.f32.mrf.mxu0
        %v2853 = vpop.f32.mrf.mxu0
        %v2854 = vadd.f32 %v2670, %v2853
        %v2855 = vpop.f32.mrf.mxu0
        %2856 = vmatprep.mubr.bf16.mxu0 %v2649
        %2857 = vmatmul.mubr.bf16.gmra.mxu0 %v2648
        %v2858 = vpop.f32.mrf.mxu0
        %v2859 = vadd.f32 %v2670, %v2858
        %v2860 = vpop.f32.mrf.mxu0
        %v2861 = vpop.f32.mrf.mxu0
        %v2862 = vadd.f32 %v2670, %v2861
        %v2863 = vpop.f32.mrf.mxu0
        %2864 = vmatprep.mubr.bf16.mxu0 %v2651
        %2865 = vmatmul.mubr.bf16.gmra.mxu0 %v2650
        %v2866 = vpop.f32.mrf.mxu0
        %v2867 = vadd.f32 %v2670, %v2866
        %v2868 = vpop.f32.mrf.mxu0
        %v2869 = vpop.f32.mrf.mxu0
        %v2870 = vadd.f32 %v2670, %v2869
        %v2871 = vpop.f32.mrf.mxu0
        %2872 = vmatprep.mubr.bf16.mxu0 %v2653
        %2873 = vmatmul.mubr.bf16.gmra.mxu0 %v2652
        %v2874 = vpop.f32.mrf.mxu0
        %v2875 = vadd.f32 %v2670, %v2874
        %v2876 = vpop.f32.mrf.mxu0
        %v2877 = vpop.f32.mrf.mxu0
        %v2878 = vadd.f32 %v2670, %v2877
        %v2879 = vpop.f32.mrf.mxu0
        %2880 = vmatprep.mubr.bf16.mxu0 %v2655
        %2881 = vmatmul.mubr.bf16.gmra.mxu0 %v2654
        %v2882 = vpop.f32.mrf.mxu0
        %v2883 = vadd.f32 %v2670, %v2882
        %v2884 = vpop.f32.mrf.mxu0
        %v2885 = vpop.f32.mrf.mxu0
        %v2886 = vadd.f32 %v2670, %v2885
        %v2887 = vpop.f32.mrf.mxu0
        %2888 = vmatprep.mubr.bf16.mxu0 %v2657
        %2889 = vmatmul.mubr.bf16.gmra.mxu0 %v2656
        %v2890 = vpop.f32.mrf.mxu0
        %v2891 = vadd.f32 %v2670, %v2890
        %v2892 = vpop.f32.mrf.mxu0
        %v2893 = vpop.f32.mrf.mxu0
        %v2894 = vadd.f32 %v2670, %v2893
        %v2895 = vpop.f32.mrf.mxu0
        %2896 = vmatprep.mubr.bf16.mxu0 %v2659
        %2897 = vmatmul.mubr.bf16.gmra.mxu0 %v2658
        %v2898 = vpop.f32.mrf.mxu0
        %v2899 = vadd.f32 %v2670, %v2898
        %v2900 = vpop.f32.mrf.mxu0
        %v2901 = vpop.f32.mrf.mxu0
        %v2902 = vadd.f32 %v2670, %v2901
        %v2903 = vpop.f32.mrf.mxu0
        %2904 = vmatprep.mubr.bf16.mxu0 %v2661
        %2905 = vmatmul.mubr.bf16.gmra.mxu0 %v2660
        %v2906 = vpop.f32.mrf.mxu0
        %v2907 = vadd.f32 %v2670, %v2906
        %v2908 = vpop.f32.mrf.mxu0
        %v2909 = vpop.f32.mrf.mxu0
        %v2910 = vadd.f32 %v2670, %v2909
        %v2911 = vpop.f32.mrf.mxu0
        %2912 = vmatprep.mubr.bf16.mxu0 %v2663
        %2913 = vmatmul.mubr.bf16.gmra.mxu0 %v2662
        %v2914 = vpop.f32.mrf.mxu0
        %v2915 = vadd.f32 %v2670, %v2914
        %v2916 = vpop.f32.mrf.mxu0
        %v2917 = vpop.f32.mrf.mxu0
        %v2918 = vadd.f32 %v2670, %v2917
        %v2919 = vpop.f32.mrf.mxu0
        %2920 = vmatprep.mubr.bf16.mxu0 %v2665
        %2921 = vmatmul.mubr.bf16.gmra.mxu0 %v2664
        %v2922 = vpop.f32.mrf.mxu0
        %v2923 = vadd.f32 %v2670, %v2922
        %v2924 = vpop.f32.mrf.mxu0
        %v2925 = vpop.f32.mrf.mxu0
        %v2926 = vadd.f32 %v2670, %v2925
        %v2927 = vpop.f32.mrf.mxu0
        %2928 = vdwg.mxu0
        %2929 = vst [vmem:[%s570] sm:$0xff] %v2803
        %2930 = vst [vmem:[%s570 + $0x8] sm:$0xff] %v2806
        %2931 = vst [vmem:[%s570 + $0x10] sm:$0xff] %v2811
        %2932 = vst [vmem:[%s570 + $0x18] sm:$0xff] %v2814
        %2933 = vst [vmem:[%s570 + $0x20] sm:$0xff] %v2819
        %2934 = vst [vmem:[%s570 + $0x28] sm:$0xff] %v2822
        %2935 = vst [vmem:[%s570 + $0x30] sm:$0xff] %v2827
        %2936 = vst [vmem:[%s570 + $0x38] sm:$0xff] %v2830
        %2937 = vst [vmem:[%s570 + $0x40] sm:$0xff] %v2835
        %2938 = vst [vmem:[%s570 + $0x48] sm:$0xff] %v2838
        %2939 = vst [vmem:[%s570 + $0x50] sm:$0xff] %v2843
        %2940 = vst [vmem:[%s570 + $0x58] sm:$0xff] %v2846
        %2941 = vst [vmem:[%s570 + $0x60] sm:$0xff] %v2851
        %2942 = vst [vmem:[%s570 + $0x68] sm:$0xff] %v2854
        %2943 = vst [vmem:[%s570 + $0x70] sm:$0xff] %v2859
        %2944 = vst [vmem:[%s570 + $0x78] sm:$0xff] %v2862
        %2945 = vst [vmem:[%s570 + $0x80] sm:$0xff] %v2867
        %2946 = vst [vmem:[%s570 + $0x88] sm:$0xff] %v2870
        %2947 = vst [vmem:[%s570 + $0x90] sm:$0xff] %v2875
        %2948 = vst [vmem:[%s570 + $0x98] sm:$0xff] %v2878
        %2949 = vst [vmem:[%s570 + $0xa0] sm:$0xff] %v2883
        %2950 = vst [vmem:[%s570 + $0xa8] sm:$0xff] %v2886
        %2951 = vst [vmem:[%s570 + $0xb0] sm:$0xff] %v2891
        %2952 = vst [vmem:[%s570 + $0xb8] sm:$0xff] %v2894
        %2953 = vst [vmem:[%s570 + $0xc0] sm:$0xff] %v2899
        %2954 = vst [vmem:[%s570 + $0xc8] sm:$0xff] %v2902
        %2955 = vst [vmem:[%s570 + $0xd0] sm:$0xff] %v2907
        %2956 = vst [vmem:[%s570 + $0xd8] sm:$0xff] %v2910
        %2957 = vst [vmem:[%s570 + $0xe0] sm:$0xff] %v2915
        %2958 = vst [vmem:[%s570 + $0xe8] sm:$0xff] %v2918
        %2959 = vst [vmem:[%s570 + $0xf0] sm:$0xff] %v2923
        %2960 = vst [vmem:[%s570 + $0xf8] sm:$0xff] %v2926
        %s2961 = sand.u32 %s362, 1
        %s2962 = scalar_lea.sflag [#allocation4], %s2961
        %s2963 = sand.u32 %s362, 1
        %s2964 = smul.addr %s2963, 256
        %s2965 = scalar_lea.vmem [#allocation11], %s2964
        // Predicated region
        $region101: #{tpu_custom_call.1} parent=79 // pred_check
          %p2966 = pneg %p372
        $region102: #{tpu_custom_call.1} parent=79 // pred_check_branch
          %2968 = sbr.rel (%p2966) target = $region104
        $region103: #{tpu_custom_call.1} parent=79 // pred_region
          %s2969 = smul.u32 32, %s34
          %s2971 = ssub.s32 4096, 4096
          %2972 = vsyncadd %s2962, %s2971
          %s2973 = smul.addr %s2969, 128
          %s2974 = scalar_lea.hbm %s15, %s2973
          %s2975 = sshll.u32 %s2965, 4
          %s2976 = int_to_ptr.vmem [resolvable:$true] %s2975
          %2981 = dma.vmem_to_hbm [thread:$0]  %s2976, 4096, %s2974, %s2962, 128, 128, 8
        $region104: #{tpu_custom_call.1} parent=79 // pred_fallthru
          _
      $region80: #{tpu_custom_call.1} parent=5 // pred_fallthru
        _
      %p2982 = scmp.le.s32.totalorder 2, %s29
      // Predicated region
      $region105: #{tpu_custom_call.1} parent=5 // pred_check
        %p2983 = pneg %p2982
      $region106: #{tpu_custom_call.1} parent=5 // pred_check_branch
        %2985 = sbr.rel (%p2983) target = $region108
      $region107: #{tpu_custom_call.1} parent=5 // pred_region
        %s2986 = ssub.s32 %s29, 2
        // Predicated region
        $region109: #{tpu_custom_call.1} parent=107 // pred_check
          %p2987 = pneg %p378
        $region110: #{tpu_custom_call.1} parent=107 // pred_check_branch
          %2989 = sbr.rel (%p2987) target = $region112
        $region111: #{tpu_custom_call.1} parent=107 // pred_region
          %s2990 = sand.u32 %s363, 1
          %s2991 = scalar_lea.sflag [#allocation4], %s2990
          %s2992 = sand.u32 %s363, 1
          %s2993 = smul.addr %s2992, 256
          %s2994 = scalar_lea.vmem [#allocation11], %s2993
          %2995 = dma.done %s2991, 4096
        $region112: #{tpu_custom_call.1} parent=107 // pred_fallthru
          _
      $region108: #{tpu_custom_call.1} parent=5 // pred_fallthru
        _
    $region6: #{tpu_custom_call.1} parent=1 // loop_footer
      %s33 = sadd.s32 1, %s29
    $region7: #{tpu_custom_call.1} parent=1 // loop_footer_branch
      %28 = sbr.rel target = $region3
    $region8: #{tpu_custom_call.1} parent=1 // loop_exit
      _
    %2996 = vsyncpa [#allocation3], 1
    %s2997 = scalar_lea.sflag [#allocation3], 1
    %2998 = vsyncpa %s2997, 1
    %2999 = vsyncpa [#allocation6], 1
    %3000 = vsyncpa [#allocation9], 1
    %3001 = vsyncpa [#allocation4], 1
    %s3002 = scalar_lea.sflag [#allocation4], 1
    %3003 = vsyncpa %s3002, 1

</llo_original>
